<compile_context>
chip_gen: v7x
topology: tpu7x:2x2x1
jax: 0.10.0
libtpu: 0.0.40
codegen_flags: <defaults>
</compile_context>

<pallas_src>
import functools

import jax
import jax.numpy as jnp
from jax.experimental import pallas as pl
from jax.experimental.pallas import tpu as pltpu


def _round_up(x, m):
    return (x + m - 1) // m * m


def _lstm_layer_kernel(xu_ref, w_ref, c0_ref, h0_ref,
                       out_ref, cfin_ref, hfin_ref,
                       c_sc, h_sc, *, hidden_pad, block_t, seq_len):
    """One LSTM layer, one (batch-tile, time-chunk) grid step.

    xu_ref : (Tb, Bt, 4*Hp)  precomputed x@U + bias (f32)
    w_ref  : (Hp, 4*Hp)      recurrent weight (compute dtype, e.g. bf16)
    c0/h0  : (Bt, Hp)        initial states for this batch tile (f32)
    out    : (Tb, Bt, Hp)    per-timestep hidden output (f32)
    c/h_sc : (Bt, Hp)        f32 VMEM state carried across time chunks
    """
    tb = pl.program_id(1)                      # time-chunk index ("arbitrary")

    @pl.when(tb == 0)
    def _():                                   # fresh state for this batch tile
        c_sc[...] = c0_ref[...]
        h_sc[...] = h0_ref[...]

    Hp = hidden_pad
    w = w_ref[...]                             # loaded once per grid step

    def step(i, carry):
        c_prev, h_prev = carry
        # gates = (x@U + b)  +  h_prev @ W        -> (Bt, 4*Hp), f32 accumulate
        gates = xu_ref[i] + jnp.dot(h_prev.astype(w.dtype), w,
                                    preferred_element_type=jnp.float32)
        # Gate order matches the module's torch.chunk: [f, i, c_new, o].
        f = jax.nn.sigmoid(gates[:, 0 * Hp:1 * Hp])
        i_g = jax.nn.sigmoid(gates[:, 1 * Hp:2 * Hp])
        g = jnp.tanh(gates[:, 2 * Hp:3 * Hp])
        o = jax.nn.sigmoid(gates[:, 3 * Hp:4 * Hp])
        c_t = c_prev * f + i_g * g
        h_t = o * jnp.tanh(c_t)
        # Mask padding timesteps (when T % block_t != 0) so the carried state
        # is exactly the state after the last real timestep.
        valid = tb * block_t + i < seq_len
        c_t = jnp.where(valid, c_t, c_prev)
        h_t = jnp.where(valid, h_t, h_prev)
        out_ref[i] = h_t
        return c_t, h_t

    c_fin, h_fin = jax.lax.fori_loop(0, block_t, step,
                                     (c_sc[...], h_sc[...]), unroll=True)
    c_sc[...] = c_fin
    h_sc[...] = h_fin

    # Final states: only materialized on the last time chunk.
    @pl.when(tb == pl.num_programs(1) - 1)
    def _():
        cfin_ref[...] = c_fin
        hfin_ref[...] = h_fin


def lstm_layer_pallas(x, U, W, b, c0, h0, *, block_t=8, block_b=8,
                      compute_dtype=jnp.bfloat16):
    """One LSTM layer.

    x: (T, B, E); U: (E, 4H); W: (H, 4H); b: (4H,) = BU + BW; c0, h0: (B, H).
    Returns (outputs (T, B, H) f32, c_final (B, H) f32, h_final (B, H) f32).
    """
    T, B, E = x.shape
    H = W.shape[0]
    f32 = jnp.float32

    # --- tile-aligned padded sizes -----------------------------------------
    Hp = _round_up(H, 128)                     # lane-aligned gate/output width
    Bp = _round_up(B, 8)                       # sublane-aligned batch
    Tb = max(1, min(block_t, T))               # timesteps per grid step
    Tp = _round_up(T, Tb)
    Bt = min(_round_up(block_b, 8), Bp)        # batch tile ("parallel" axis)
    if Bp % Bt != 0:
        Bt = Bp

    # --- re-lay weights so each gate occupies a lane-aligned slab of Hp ----
    U_p = jnp.zeros((E, 4, Hp), f32).at[:, :, :H].set(
        U.reshape(E, 4, H).astype(f32)).reshape(E, 4 * Hp)
    W_p = jnp.zeros((Hp, 4, Hp), f32).at[:H, :, :H].set(
        W.reshape(H, 4, H).astype(f32)).reshape(Hp, 4 * Hp)
    b_p = jnp.zeros((4, Hp), f32).at[:, :H].set(
        b.reshape(4, H).astype(f32)).reshape(4 * Hp)

    x_p = jnp.zeros((Tp, Bp, E), f32).at[:T, :B].set(x.astype(f32))
    c0_p = jnp.zeros((Bp, Hp), f32).at[:B, :H].set(c0.astype(f32))
    h0_p = jnp.zeros((Bp, Hp), f32).at[:B, :H].set(h0.astype(f32))

    # --- hoisted input projection: one big MXU GEMM, bias folded in --------
    xu = (jnp.dot(x_p.reshape(Tp * Bp, E).astype(compute_dtype),
                  U_p.astype(compute_dtype),
                  preferred_element_type=f32)
          .reshape(Tp, Bp, 4 * Hp) + b_p)      # kept f32 for accuracy
    w_c = W_p.astype(compute_dtype)            # recurrent weight for the MXU

    kernel = functools.partial(_lstm_layer_kernel, hidden_pad=Hp,
                               block_t=Tb, seq_len=T)
    outs, c_fin, h_fin = pl.pallas_call(
        kernel,
        out_shape=(
            jax.ShapeDtypeStruct((Tp, Bp, Hp), f32),
            jax.ShapeDtypeStruct((Bp, Hp), f32),
            jax.ShapeDtypeStruct((Bp, Hp), f32),
        ),
        grid_spec=pltpu.PrefetchScalarGridSpec(
            num_scalar_prefetch=0,
            grid=(Bp // Bt, Tp // Tb),                 # (batch tiles, time chunks)
            in_specs=[
                pl.BlockSpec((Tb, Bt, 4 * Hp), lambda bt, tb: (tb, bt, 0)),  # XU+b
                pl.BlockSpec((Hp, 4 * Hp), lambda bt, tb: (0, 0)),           # W
                pl.BlockSpec((Bt, Hp), lambda bt, tb: (bt, 0)),              # c0
                pl.BlockSpec((Bt, Hp), lambda bt, tb: (bt, 0)),              # h0
            ],
            out_specs=[
                pl.BlockSpec((Tb, Bt, Hp), lambda bt, tb: (tb, bt, 0)),      # h[t]
                pl.BlockSpec((Bt, Hp), lambda bt, tb: (bt, 0)),              # c_fin
                pl.BlockSpec((Bt, Hp), lambda bt, tb: (bt, 0)),              # h_fin
            ],
            scratch_shapes=[
                pltpu.VMEM((Bt, Hp), f32),     # cell-state carry
                pltpu.VMEM((Bt, Hp), f32),     # hidden-state carry
            ],
        ),
        compiler_params=pltpu.CompilerParams(
            # batch tiles are independent (2 TCs on v7x); time is a recurrence
            dimension_semantics=("parallel", "arbitrary"),
        ),
    )(xu, w_c, c0_p, h0_p)
    return outs[:T, :B, :H], c_fin[:B, :H], h_fin[:B, :H]


def init_lstm_params(key, emb_size, hidden_size, num_layers):
    """Mirrors LSTMCell.reset_parameters: uniform(-stdv, stdv), stdv=1/sqrt(H).
    Bias is stored combined (BU + BW), shape (4H,)."""
    stdv = 1.0 / jnp.sqrt(jnp.float32(hidden_size))
    params = []
    for layer in range(num_layers):
        in_size = emb_size if layer == 0 else hidden_size
        key, k1, k2, k3, k4 = jax.random.split(key, 5)
        U = jax.random.uniform(k1, (in_size, 4 * hidden_size), jnp.float32, -stdv, stdv)
        BU = jax.random.uniform(k2, (4 * hidden_size,), jnp.float32, -stdv, stdv)
        W = jax.random.uniform(k3, (hidden_size, 4 * hidden_size), jnp.float32, -stdv, stdv)
        BW = jax.random.uniform(k4, (4 * hidden_size,), jnp.float32, -stdv, stdv)
        params.append((U, W, BU + BW))
    return params


def lstm_forward(params, X_batch, initial_states, *, block_t=8,
                 compute_dtype=jnp.bfloat16):
    """Equivalent of LSTM.forward (eval mode: dropout = identity).

    Every LSTMLayer receives the SAME original initial_states, as in the
    PyTorch module. Returns (outputs, (cell_state, hidden_state)) of the last
    layer.
    """
    c0, h0 = initial_states
    x = X_batch
    states = None
    for (U, W, b) in params:
        # Dropout (identity at inference) would go here.
        x, c_fin, h_fin = lstm_layer_pallas(x, U, W, b, c0, h0,
                                            block_t=block_t,
                                            compute_dtype=compute_dtype)
        states = (c_fin, h_fin)
    # Final Dropout (identity at inference).
    return x, states


def _reference_lstm(params, X_batch, initial_states):
    """Pure-JAX f32 reference for correctness checking."""
    c0, h0 = initial_states
    x = X_batch
    states = None
    H = h0.shape[-1]
    for (U, W, b) in params:
        c, h = c0, h0
        outs = []
        for t in range(x.shape[0]):
            gates = x[t] @ U + h @ W + b
            f = jax.nn.sigmoid(gates[:, 0 * H:1 * H])
            i = jax.nn.sigmoid(gates[:, 1 * H:2 * H])
            g = jnp.tanh(gates[:, 2 * H:3 * H])
            o = jax.nn.sigmoid(gates[:, 3 * H:4 * H])
            c = c * f + i * g
            h = o * jnp.tanh(c)
            outs.append(h)
        x = jnp.stack(outs)
        states = (c, h)
    return x, states


if __name__ == "__main__":
    # Small shapes consistent with the module's forward.
    seq_len, batch, emb_size, hidden_size = 8, 2, 16, 32
    num_layers = 2   # dropout_rate is irrelevant at inference (identity)

    key = jax.random.PRNGKey(0)
    key, kx, kc, kh, kp = jax.random.split(key, 5)

    X_batch = jax.random.normal(kx, (seq_len, batch, emb_size), jnp.float32)
    c0 = jax.random.normal(kc, (batch, hidden_size), jnp.float32)
    h0 = jax.random.normal(kh, (batch, hidden_size), jnp.float32)
    params = init_lstm_params(kp, emb_size, hidden_size, num_layers)

    ref_out, (ref_c, ref_h) = _reference_lstm(params, X_batch, (c0, h0))

    # Recommended path: bf16 matmul operands, f32 accumulation.
    out, (c_f, h_f) = lstm_forward(params, X_batch, (c0, h0),
                                   block_t=8, compute_dtype=jnp.bfloat16)
    jax.block_until_ready((out, c_f, h_f))
    assert out.shape == (seq_len, batch, hidden_size)
    assert c_f.shape == (batch, hidden_size) and h_f.shape == (batch, hidden_size)
    assert jnp.allclose(out, ref_out, atol=1e-1), "bf16 outputs mismatch"
    assert jnp.allclose(c_f, ref_c, atol=1e-1), "bf16 cell state mismatch"
    assert jnp.allclose(h_f, ref_h, atol=1e-1), "bf16 hidden state mismatch"

    # f32 path with a time block that does NOT divide T (exercises masking).
    out32, (c32, h32) = lstm_forward(params, X_batch, (c0, h0),
                                     block_t=3, compute_dtype=jnp.float32)
    jax.block_until_ready((out32, c32, h32))
    assert jnp.allclose(out32, ref_out, atol=1e-3), "f32 outputs mismatch"
    assert jnp.allclose(c32, ref_c, atol=1e-3), "f32 cell state mismatch"
    assert jnp.allclose(h32, ref_h, atol=1e-3), "f32 hidden state mismatch"

    print("KERNEL_OK")
</pallas_src>

<mosaic_0001>
module attributes {stable_mosaic.version = 11 : i64} {
  func.func @_lstm_layer_kernel(%arg0: i32, %arg1: i32, %arg2: memref<8x8x512xf32, #tpu.memory_space<vmem>>, %arg3: memref<128x512xbf16, #tpu.memory_space<vmem>>, %arg4: memref<8x128xf32, #tpu.memory_space<vmem>>, %arg5: memref<8x128xf32, #tpu.memory_space<vmem>>, %arg6: memref<8x8x128xf32, #tpu.memory_space<vmem>>, %arg7: memref<8x128xf32, #tpu.memory_space<vmem>>, %arg8: memref<8x128xf32, #tpu.memory_space<vmem>>, %arg9: memref<8x128xf32, #tpu.memory_space<vmem>>, %arg10: memref<8x128xf32, #tpu.memory_space<vmem>>) attributes {dimension_semantics = [#tpu.dimension_semantics<parallel>, #tpu.dimension_semantics<arbitrary>], iteration_bounds = array<i64: 1, 1>, scalar_prefetch = 0 : i64, scratch_operands = 2 : i64, tpu.core_type = #tpu.core_type<tc>, window_params = [{transform_indices = @transform_0, window_bounds = array<i64: 8, 8, 512>}, {pipeline_mode = #tpu.pipeline_mode<synchronous>, transform_indices = @transform_1, window_bounds = array<i64: 128, 512>}, {transform_indices = @transform_2, window_bounds = array<i64: 8, 128>}, {transform_indices = @transform_3, window_bounds = array<i64: 8, 128>}, {transform_indices = @transform_4, window_bounds = array<i64: 8, 8, 128>}, {transform_indices = @transform_5, window_bounds = array<i64: 8, 128>}, {transform_indices = @transform_6, window_bounds = array<i64: 8, 128>}]} {
    %c0_i32 = arith.constant 0 : i32
    %0 = arith.cmpi eq, %arg1, %c0_i32 : i32
    %1 = arith.extui %0 : i1 to i32
    %c0_i32_0 = arith.constant 0 : i32
    %2 = arith.cmpi ne, %1, %c0_i32_0 : i32
    scf.if %2 {
      %c0_92 = arith.constant 0 : index
      %c0_93 = arith.constant 0 : index
      %331 = vector.load %arg4[%c0_92, %c0_93] : memref<8x128xf32, #tpu.memory_space<vmem>>, vector<8x128xf32>
      %c0_94 = arith.constant 0 : index
      %c0_95 = arith.constant 0 : index
      %332 = vector.load %arg9[%c0_94, %c0_95] : memref<8x128xf32, #tpu.memory_space<vmem>>, vector<8x128xf32>
      tpu.vector_store %arg9[%c0_94, %c0_95], %331 {strides = array<i32>} : memref<8x128xf32, #tpu.memory_space<vmem>>, vector<8x128xf32>,
      %c0_96 = arith.constant 0 : index
      %c0_97 = arith.constant 0 : index
      %333 = vector.load %arg5[%c0_96, %c0_97] : memref<8x128xf32, #tpu.memory_space<vmem>>, vector<8x128xf32>
      %c0_98 = arith.constant 0 : index
      %c0_99 = arith.constant 0 : index
      %334 = vector.load %arg10[%c0_98, %c0_99] : memref<8x128xf32, #tpu.memory_space<vmem>>, vector<8x128xf32>
      tpu.vector_store %arg10[%c0_98, %c0_99], %333 {strides = array<i32>} : memref<8x128xf32, #tpu.memory_space<vmem>>, vector<8x128xf32>,
    } else {
    }
    %c0 = arith.constant 0 : index
    %c0_1 = arith.constant 0 : index
    %3 = vector.load %arg3[%c0, %c0_1] : memref<128x512xbf16, #tpu.memory_space<vmem>>, vector<128x512xbf16>
    %c0_2 = arith.constant 0 : index
    %c0_3 = arith.constant 0 : index
    %4 = vector.load %arg9[%c0_2, %c0_3] : memref<8x128xf32, #tpu.memory_space<vmem>>, vector<8x128xf32>
    %c0_4 = arith.constant 0 : index
    %c0_5 = arith.constant 0 : index
    %5 = vector.load %arg10[%c0_4, %c0_5] : memref<8x128xf32, #tpu.memory_space<vmem>>, vector<8x128xf32>
    %c0_i32_6 = arith.constant 0 : i32
    %6 = arith.index_cast %c0_i32_6 : i32 to index
    %c0_7 = arith.constant 0 : index
    %c0_8 = arith.constant 0 : index
    %7 = vector.load %arg2[%6, %c0_7, %c0_8] : memref<8x8x512xf32, #tpu.memory_space<vmem>>, vector<1x8x512xf32>
    %8 = vector.shape_cast %7 : vector<1x8x512xf32> to vector<8x512xf32>
    %9 = arith.truncf %5 : vector<8x128xf32> to vector<8x128xbf16>
    %cst = arith.constant dense<0.000000e+00> : vector<8x512xf32>
    %10 = tpu.matmul %9, %3, %cst {dimension_numbers = #tpu.dot_dimension_numbers<[1], [0], [0], [1], [0, 0, 1, 1], [], []>} : vector<8x128xbf16>, vector<128x512xbf16>, vector<8x512xf32> -> vector<8x512xf32>
    %11 = arith.addf %8, %10 : vector<8x512xf32>
    %12 = vector.extract_strided_slice %11 {offsets = [0, 0], sizes = [8, 128], strides = [1, 1]} : vector<8x512xf32> to vector<8x128xf32>
    %13 = arith.negf %12 : vector<8x128xf32>
    %14 = math.exp %13 : vector<8x128xf32>
    %cst_9 = arith.constant 1.000000e+00 : f32
    %15 = vector.broadcast %cst_9 : f32 to vector<8x128xf32>
    %16 = arith.addf %15, %14 : vector<8x128xf32>
    %17 = arith.divf %15, %16 : vector<8x128xf32>
    %18 = vector.extract_strided_slice %11 {offsets = [0, 128], sizes = [8, 128], strides = [1, 1]} : vector<8x512xf32> to vector<8x128xf32>
    %19 = arith.negf %18 : vector<8x128xf32>
    %20 = math.exp %19 : vector<8x128xf32>
    %cst_10 = arith.constant 1.000000e+00 : f32
    %21 = vector.broadcast %cst_10 : f32 to vector<8x128xf32>
    %22 = arith.addf %21, %20 : vector<8x128xf32>
    %23 = arith.divf %21, %22 : vector<8x128xf32>
    %24 = vector.extract_strided_slice %11 {offsets = [0, 256], sizes = [8, 128], strides = [1, 1]} : vector<8x512xf32> to vector<8x128xf32>
    %25 = math.tanh %24 : vector<8x128xf32>
    %26 = vector.extract_strided_slice %11 {offsets = [0, 384], sizes = [8, 128], strides = [1, 1]} : vector<8x512xf32> to vector<8x128xf32>
    %27 = arith.negf %26 : vector<8x128xf32>
    %28 = math.exp %27 : vector<8x128xf32>
    %cst_11 = arith.constant 1.000000e+00 : f32
    %29 = vector.broadcast %cst_11 : f32 to vector<8x128xf32>
    %30 = arith.addf %29, %28 : vector<8x128xf32>
    %31 = arith.divf %29, %30 : vector<8x128xf32>
    %32 = arith.mulf %4, %17 : vector<8x128xf32>
    %33 = arith.mulf %23, %25 : vector<8x128xf32>
    %34 = arith.addf %32, %33 : vector<8x128xf32>
    %35 = math.tanh %34 : vector<8x128xf32>
    %36 = arith.mulf %31, %35 : vector<8x128xf32>
    %c8_i32 = arith.constant 8 : i32
    %37 = arith.muli %arg1, %c8_i32 : i32
    %38 = arith.addi %37, %c0_i32_6 : i32
    %c8_i32_12 = arith.constant 8 : i32
    %39 = arith.cmpi slt, %38, %c8_i32_12 : i32
    %40 = arith.select %39, %34, %4 : vector<8x128xf32>
    %41 = arith.select %39, %36, %5 : vector<8x128xf32>
    %42 = arith.index_cast %c0_i32_6 : i32 to index
    %c0_13 = arith.constant 0 : index
    %c0_14 = arith.constant 0 : index
    %43 = vector.load %arg6[%42, %c0_13, %c0_14] : memref<8x8x128xf32, #tpu.memory_space<vmem>>, vector<1x8x128xf32>
    %44 = vector.shape_cast %43 : vector<1x8x128xf32> to vector<8x128xf32>
    %45 = vector.shape_cast %41 : vector<8x128xf32> to vector<1x8x128xf32>
    tpu.vector_store %arg6[%42, %c0_13, %c0_14], %45 {strides = array<i32>} : memref<8x8x128xf32, #tpu.memory_space<vmem>>, vector<1x8x128xf32>,
    %c1_i32 = arith.constant 1 : i32
    %46 = arith.index_cast %c1_i32 : i32 to index
    %c0_15 = arith.constant 0 : index
    %c0_16 = arith.constant 0 : index
    %47 = vector.load %arg2[%46, %c0_15, %c0_16] : memref<8x8x512xf32, #tpu.memory_space<vmem>>, vector<1x8x512xf32>
    %48 = vector.shape_cast %47 : vector<1x8x512xf32> to vector<8x512xf32>
    %49 = arith.truncf %41 : vector<8x128xf32> to vector<8x128xbf16>
    %cst_17 = arith.constant dense<0.000000e+00> : vector<8x512xf32>
    %50 = tpu.matmul %49, %3, %cst_17 {dimension_numbers = #tpu.dot_dimension_numbers<[1], [0], [0], [1], [0, 0, 1, 1], [], []>} : vector<8x128xbf16>, vector<128x512xbf16>, vector<8x512xf32> -> vector<8x512xf32>
    %51 = arith.addf %48, %50 : vector<8x512xf32>
    %52 = vector.extract_strided_slice %51 {offsets = [0, 0], sizes = [8, 128], strides = [1, 1]} : vector<8x512xf32> to vector<8x128xf32>
    %53 = arith.negf %52 : vector<8x128xf32>
    %54 = math.exp %53 : vector<8x128xf32>
    %cst_18 = arith.constant 1.000000e+00 : f32
    %55 = vector.broadcast %cst_18 : f32 to vector<8x128xf32>
    %56 = arith.addf %55, %54 : vector<8x128xf32>
    %57 = arith.divf %55, %56 : vector<8x128xf32>
    %58 = vector.extract_strided_slice %51 {offsets = [0, 128], sizes = [8, 128], strides = [1, 1]} : vector<8x512xf32> to vector<8x128xf32>
    %59 = arith.negf %58 : vector<8x128xf32>
    %60 = math.exp %59 : vector<8x128xf32>
    %cst_19 = arith.constant 1.000000e+00 : f32
    %61 = vector.broadcast %cst_19 : f32 to vector<8x128xf32>
    %62 = arith.addf %61, %60 : vector<8x128xf32>
    %63 = arith.divf %61, %62 : vector<8x128xf32>
    %64 = vector.extract_strided_slice %51 {offsets = [0, 256], sizes = [8, 128], strides = [1, 1]} : vector<8x512xf32> to vector<8x128xf32>
    %65 = math.tanh %64 : vector<8x128xf32>
    %66 = vector.extract_strided_slice %51 {offsets = [0, 384], sizes = [8, 128], strides = [1, 1]} : vector<8x512xf32> to vector<8x128xf32>
    %67 = arith.negf %66 : vector<8x128xf32>
    %68 = math.exp %67 : vector<8x128xf32>
    %cst_20 = arith.constant 1.000000e+00 : f32
    %69 = vector.broadcast %cst_20 : f32 to vector<8x128xf32>
    %70 = arith.addf %69, %68 : vector<8x128xf32>
    %71 = arith.divf %69, %70 : vector<8x128xf32>
    %72 = arith.mulf %40, %57 : vector<8x128xf32>
    %73 = arith.mulf %63, %65 : vector<8x128xf32>
    %74 = arith.addf %72, %73 : vector<8x128xf32>
    %75 = math.tanh %74 : vector<8x128xf32>
    %76 = arith.mulf %71, %75 : vector<8x128xf32>
    %c8_i32_21 = arith.constant 8 : i32
    %77 = arith.muli %arg1, %c8_i32_21 : i32
    %78 = arith.addi %77, %c1_i32 : i32
    %c8_i32_22 = arith.constant 8 : i32
    %79 = arith.cmpi slt, %78, %c8_i32_22 : i32
    %80 = arith.select %79, %74, %40 : vector<8x128xf32>
    %81 = arith.select %79, %76, %41 : vector<8x128xf32>
    %82 = arith.index_cast %c1_i32 : i32 to index
    %c0_23 = arith.constant 0 : index
    %c0_24 = arith.constant 0 : index
    %83 = vector.load %arg6[%82, %c0_23, %c0_24] : memref<8x8x128xf32, #tpu.memory_space<vmem>>, vector<1x8x128xf32>
    %84 = vector.shape_cast %83 : vector<1x8x128xf32> to vector<8x128xf32>
    %85 = vector.shape_cast %81 : vector<8x128xf32> to vector<1x8x128xf32>
    tpu.vector_store %arg6[%82, %c0_23, %c0_24], %85 {strides = array<i32>} : memref<8x8x128xf32, #tpu.memory_space<vmem>>, vector<1x8x128xf32>,
    %c2_i32 = arith.constant 2 : i32
    %86 = arith.index_cast %c2_i32 : i32 to index
    %c0_25 = arith.constant 0 : index
    %c0_26 = arith.constant 0 : index
    %87 = vector.load %arg2[%86, %c0_25, %c0_26] : memref<8x8x512xf32, #tpu.memory_space<vmem>>, vector<1x8x512xf32>
    %88 = vector.shape_cast %87 : vector<1x8x512xf32> to vector<8x512xf32>
    %89 = arith.truncf %81 : vector<8x128xf32> to vector<8x128xbf16>
    %cst_27 = arith.constant dense<0.000000e+00> : vector<8x512xf32>
    %90 = tpu.matmul %89, %3, %cst_27 {dimension_numbers = #tpu.dot_dimension_numbers<[1], [0], [0], [1], [0, 0, 1, 1], [], []>} : vector<8x128xbf16>, vector<128x512xbf16>, vector<8x512xf32> -> vector<8x512xf32>
    %91 = arith.addf %88, %90 : vector<8x512xf32>
    %92 = vector.extract_strided_slice %91 {offsets = [0, 0], sizes = [8, 128], strides = [1, 1]} : vector<8x512xf32> to vector<8x128xf32>
    %93 = arith.negf %92 : vector<8x128xf32>
    %94 = math.exp %93 : vector<8x128xf32>
    %cst_28 = arith.constant 1.000000e+00 : f32
    %95 = vector.broadcast %cst_28 : f32 to vector<8x128xf32>
    %96 = arith.addf %95, %94 : vector<8x128xf32>
    %97 = arith.divf %95, %96 : vector<8x128xf32>
    %98 = vector.extract_strided_slice %91 {offsets = [0, 128], sizes = [8, 128], strides = [1, 1]} : vector<8x512xf32> to vector<8x128xf32>
    %99 = arith.negf %98 : vector<8x128xf32>
    %100 = math.exp %99 : vector<8x128xf32>
    %cst_29 = arith.constant 1.000000e+00 : f32
    %101 = vector.broadcast %cst_29 : f32 to vector<8x128xf32>
    %102 = arith.addf %101, %100 : vector<8x128xf32>
    %103 = arith.divf %101, %102 : vector<8x128xf32>
    %104 = vector.extract_strided_slice %91 {offsets = [0, 256], sizes = [8, 128], strides = [1, 1]} : vector<8x512xf32> to vector<8x128xf32>
    %105 = math.tanh %104 : vector<8x128xf32>
    %106 = vector.extract_strided_slice %91 {offsets = [0, 384], sizes = [8, 128], strides = [1, 1]} : vector<8x512xf32> to vector<8x128xf32>
    %107 = arith.negf %106 : vector<8x128xf32>
    %108 = math.exp %107 : vector<8x128xf32>
    %cst_30 = arith.constant 1.000000e+00 : f32
    %109 = vector.broadcast %cst_30 : f32 to vector<8x128xf32>
    %110 = arith.addf %109, %108 : vector<8x128xf32>
    %111 = arith.divf %109, %110 : vector<8x128xf32>
    %112 = arith.mulf %80, %97 : vector<8x128xf32>
    %113 = arith.mulf %103, %105 : vector<8x128xf32>
    %114 = arith.addf %112, %113 : vector<8x128xf32>
    %115 = math.tanh %114 : vector<8x128xf32>
    %116 = arith.mulf %111, %115 : vector<8x128xf32>
    %c8_i32_31 = arith.constant 8 : i32
    %117 = arith.muli %arg1, %c8_i32_31 : i32
    %118 = arith.addi %117, %c2_i32 : i32
    %c8_i32_32 = arith.constant 8 : i32
    %119 = arith.cmpi slt, %118, %c8_i32_32 : i32
    %120 = arith.select %119, %114, %80 : vector<8x128xf32>
    %121 = arith.select %119, %116, %81 : vector<8x128xf32>
    %122 = arith.index_cast %c2_i32 : i32 to index
    %c0_33 = arith.constant 0 : index
    %c0_34 = arith.constant 0 : index
    %123 = vector.load %arg6[%122, %c0_33, %c0_34] : memref<8x8x128xf32, #tpu.memory_space<vmem>>, vector<1x8x128xf32>
    %124 = vector.shape_cast %123 : vector<1x8x128xf32> to vector<8x128xf32>
    %125 = vector.shape_cast %121 : vector<8x128xf32> to vector<1x8x128xf32>
    tpu.vector_store %arg6[%122, %c0_33, %c0_34], %125 {strides = array<i32>} : memref<8x8x128xf32, #tpu.memory_space<vmem>>, vector<1x8x128xf32>,
    %c3_i32 = arith.constant 3 : i32
    %126 = arith.index_cast %c3_i32 : i32 to index
    %c0_35 = arith.constant 0 : index
    %c0_36 = arith.constant 0 : index
    %127 = vector.load %arg2[%126, %c0_35, %c0_36] : memref<8x8x512xf32, #tpu.memory_space<vmem>>, vector<1x8x512xf32>
    %128 = vector.shape_cast %127 : vector<1x8x512xf32> to vector<8x512xf32>
    %129 = arith.truncf %121 : vector<8x128xf32> to vector<8x128xbf16>
    %cst_37 = arith.constant dense<0.000000e+00> : vector<8x512xf32>
    %130 = tpu.matmul %129, %3, %cst_37 {dimension_numbers = #tpu.dot_dimension_numbers<[1], [0], [0], [1], [0, 0, 1, 1], [], []>} : vector<8x128xbf16>, vector<128x512xbf16>, vector<8x512xf32> -> vector<8x512xf32>
    %131 = arith.addf %128, %130 : vector<8x512xf32>
    %132 = vector.extract_strided_slice %131 {offsets = [0, 0], sizes = [8, 128], strides = [1, 1]} : vector<8x512xf32> to vector<8x128xf32>
    %133 = arith.negf %132 : vector<8x128xf32>
    %134 = math.exp %133 : vector<8x128xf32>
    %cst_38 = arith.constant 1.000000e+00 : f32
    %135 = vector.broadcast %cst_38 : f32 to vector<8x128xf32>
    %136 = arith.addf %135, %134 : vector<8x128xf32>
    %137 = arith.divf %135, %136 : vector<8x128xf32>
    %138 = vector.extract_strided_slice %131 {offsets = [0, 128], sizes = [8, 128], strides = [1, 1]} : vector<8x512xf32> to vector<8x128xf32>
    %139 = arith.negf %138 : vector<8x128xf32>
    %140 = math.exp %139 : vector<8x128xf32>
    %cst_39 = arith.constant 1.000000e+00 : f32
    %141 = vector.broadcast %cst_39 : f32 to vector<8x128xf32>
    %142 = arith.addf %141, %140 : vector<8x128xf32>
    %143 = arith.divf %141, %142 : vector<8x128xf32>
    %144 = vector.extract_strided_slice %131 {offsets = [0, 256], sizes = [8, 128], strides = [1, 1]} : vector<8x512xf32> to vector<8x128xf32>
    %145 = math.tanh %144 : vector<8x128xf32>
    %146 = vector.extract_strided_slice %131 {offsets = [0, 384], sizes = [8, 128], strides = [1, 1]} : vector<8x512xf32> to vector<8x128xf32>
    %147 = arith.negf %146 : vector<8x128xf32>
    %148 = math.exp %147 : vector<8x128xf32>
    %cst_40 = arith.constant 1.000000e+00 : f32
    %149 = vector.broadcast %cst_40 : f32 to vector<8x128xf32>
    %150 = arith.addf %149, %148 : vector<8x128xf32>
    %151 = arith.divf %149, %150 : vector<8x128xf32>
    %152 = arith.mulf %120, %137 : vector<8x128xf32>
    %153 = arith.mulf %143, %145 : vector<8x128xf32>
    %154 = arith.addf %152, %153 : vector<8x128xf32>
    %155 = math.tanh %154 : vector<8x128xf32>
    %156 = arith.mulf %151, %155 : vector<8x128xf32>
    %c8_i32_41 = arith.constant 8 : i32
    %157 = arith.muli %arg1, %c8_i32_41 : i32
    %158 = arith.addi %157, %c3_i32 : i32
    %c8_i32_42 = arith.constant 8 : i32
    %159 = arith.cmpi slt, %158, %c8_i32_42 : i32
    %160 = arith.select %159, %154, %120 : vector<8x128xf32>
    %161 = arith.select %159, %156, %121 : vector<8x128xf32>
    %162 = arith.index_cast %c3_i32 : i32 to index
    %c0_43 = arith.constant 0 : index
    %c0_44 = arith.constant 0 : index
    %163 = vector.load %arg6[%162, %c0_43, %c0_44] : memref<8x8x128xf32, #tpu.memory_space<vmem>>, vector<1x8x128xf32>
    %164 = vector.shape_cast %163 : vector<1x8x128xf32> to vector<8x128xf32>
    %165 = vector.shape_cast %161 : vector<8x128xf32> to vector<1x8x128xf32>
    tpu.vector_store %arg6[%162, %c0_43, %c0_44], %165 {strides = array<i32>} : memref<8x8x128xf32, #tpu.memory_space<vmem>>, vector<1x8x128xf32>,
    %c4_i32 = arith.constant 4 : i32
    %166 = arith.index_cast %c4_i32 : i32 to index
    %c0_45 = arith.constant 0 : index
    %c0_46 = arith.constant 0 : index
    %167 = vector.load %arg2[%166, %c0_45, %c0_46] : memref<8x8x512xf32, #tpu.memory_space<vmem>>, vector<1x8x512xf32>
    %168 = vector.shape_cast %167 : vector<1x8x512xf32> to vector<8x512xf32>
    %169 = arith.truncf %161 : vector<8x128xf32> to vector<8x128xbf16>
    %cst_47 = arith.constant dense<0.000000e+00> : vector<8x512xf32>
    %170 = tpu.matmul %169, %3, %cst_47 {dimension_numbers = #tpu.dot_dimension_numbers<[1], [0], [0], [1], [0, 0, 1, 1], [], []>} : vector<8x128xbf16>, vector<128x512xbf16>, vector<8x512xf32> -> vector<8x512xf32>
    %171 = arith.addf %168, %170 : vector<8x512xf32>
    %172 = vector.extract_strided_slice %171 {offsets = [0, 0], sizes = [8, 128], strides = [1, 1]} : vector<8x512xf32> to vector<8x128xf32>
    %173 = arith.negf %172 : vector<8x128xf32>
    %174 = math.exp %173 : vector<8x128xf32>
    %cst_48 = arith.constant 1.000000e+00 : f32
    %175 = vector.broadcast %cst_48 : f32 to vector<8x128xf32>
    %176 = arith.addf %175, %174 : vector<8x128xf32>
    %177 = arith.divf %175, %176 : vector<8x128xf32>
    %178 = vector.extract_strided_slice %171 {offsets = [0, 128], sizes = [8, 128], strides = [1, 1]} : vector<8x512xf32> to vector<8x128xf32>
    %179 = arith.negf %178 : vector<8x128xf32>
    %180 = math.exp %179 : vector<8x128xf32>
    %cst_49 = arith.constant 1.000000e+00 : f32
    %181 = vector.broadcast %cst_49 : f32 to vector<8x128xf32>
    %182 = arith.addf %181, %180 : vector<8x128xf32>
    %183 = arith.divf %181, %182 : vector<8x128xf32>
    %184 = vector.extract_strided_slice %171 {offsets = [0, 256], sizes = [8, 128], strides = [1, 1]} : vector<8x512xf32> to vector<8x128xf32>
    %185 = math.tanh %184 : vector<8x128xf32>
    %186 = vector.extract_strided_slice %171 {offsets = [0, 384], sizes = [8, 128], strides = [1, 1]} : vector<8x512xf32> to vector<8x128xf32>
    %187 = arith.negf %186 : vector<8x128xf32>
    %188 = math.exp %187 : vector<8x128xf32>
    %cst_50 = arith.constant 1.000000e+00 : f32
    %189 = vector.broadcast %cst_50 : f32 to vector<8x128xf32>
    %190 = arith.addf %189, %188 : vector<8x128xf32>
    %191 = arith.divf %189, %190 : vector<8x128xf32>
    %192 = arith.mulf %160, %177 : vector<8x128xf32>
    %193 = arith.mulf %183, %185 : vector<8x128xf32>
    %194 = arith.addf %192, %193 : vector<8x128xf32>
    %195 = math.tanh %194 : vector<8x128xf32>
    %196 = arith.mulf %191, %195 : vector<8x128xf32>
    %c8_i32_51 = arith.constant 8 : i32
    %197 = arith.muli %arg1, %c8_i32_51 : i32
    %198 = arith.addi %197, %c4_i32 : i32
    %c8_i32_52 = arith.constant 8 : i32
    %199 = arith.cmpi slt, %198, %c8_i32_52 : i32
    %200 = arith.select %199, %194, %160 : vector<8x128xf32>
    %201 = arith.select %199, %196, %161 : vector<8x128xf32>
    %202 = arith.index_cast %c4_i32 : i32 to index
    %c0_53 = arith.constant 0 : index
    %c0_54 = arith.constant 0 : index
    %203 = vector.load %arg6[%202, %c0_53, %c0_54] : memref<8x8x128xf32, #tpu.memory_space<vmem>>, vector<1x8x128xf32>
    %204 = vector.shape_cast %203 : vector<1x8x128xf32> to vector<8x128xf32>
    %205 = vector.shape_cast %201 : vector<8x128xf32> to vector<1x8x128xf32>
    tpu.vector_store %arg6[%202, %c0_53, %c0_54], %205 {strides = array<i32>} : memref<8x8x128xf32, #tpu.memory_space<vmem>>, vector<1x8x128xf32>,
    %c5_i32 = arith.constant 5 : i32
    %206 = arith.index_cast %c5_i32 : i32 to index
    %c0_55 = arith.constant 0 : index
    %c0_56 = arith.constant 0 : index
    %207 = vector.load %arg2[%206, %c0_55, %c0_56] : memref<8x8x512xf32, #tpu.memory_space<vmem>>, vector<1x8x512xf32>
    %208 = vector.shape_cast %207 : vector<1x8x512xf32> to vector<8x512xf32>
    %209 = arith.truncf %201 : vector<8x128xf32> to vector<8x128xbf16>
    %cst_57 = arith.constant dense<0.000000e+00> : vector<8x512xf32>
    %210 = tpu.matmul %209, %3, %cst_57 {dimension_numbers = #tpu.dot_dimension_numbers<[1], [0], [0], [1], [0, 0, 1, 1], [], []>} : vector<8x128xbf16>, vector<128x512xbf16>, vector<8x512xf32> -> vector<8x512xf32>
    %211 = arith.addf %208, %210 : vector<8x512xf32>
    %212 = vector.extract_strided_slice %211 {offsets = [0, 0], sizes = [8, 128], strides = [1, 1]} : vector<8x512xf32> to vector<8x128xf32>
    %213 = arith.negf %212 : vector<8x128xf32>
    %214 = math.exp %213 : vector<8x128xf32>
    %cst_58 = arith.constant 1.000000e+00 : f32
    %215 = vector.broadcast %cst_58 : f32 to vector<8x128xf32>
    %216 = arith.addf %215, %214 : vector<8x128xf32>
    %217 = arith.divf %215, %216 : vector<8x128xf32>
    %218 = vector.extract_strided_slice %211 {offsets = [0, 128], sizes = [8, 128], strides = [1, 1]} : vector<8x512xf32> to vector<8x128xf32>
    %219 = arith.negf %218 : vector<8x128xf32>
    %220 = math.exp %219 : vector<8x128xf32>
    %cst_59 = arith.constant 1.000000e+00 : f32
    %221 = vector.broadcast %cst_59 : f32 to vector<8x128xf32>
    %222 = arith.addf %221, %220 : vector<8x128xf32>
    %223 = arith.divf %221, %222 : vector<8x128xf32>
    %224 = vector.extract_strided_slice %211 {offsets = [0, 256], sizes = [8, 128], strides = [1, 1]} : vector<8x512xf32> to vector<8x128xf32>
    %225 = math.tanh %224 : vector<8x128xf32>
    %226 = vector.extract_strided_slice %211 {offsets = [0, 384], sizes = [8, 128], strides = [1, 1]} : vector<8x512xf32> to vector<8x128xf32>
    %227 = arith.negf %226 : vector<8x128xf32>
    %228 = math.exp %227 : vector<8x128xf32>
    %cst_60 = arith.constant 1.000000e+00 : f32
    %229 = vector.broadcast %cst_60 : f32 to vector<8x128xf32>
    %230 = arith.addf %229, %228 : vector<8x128xf32>
    %231 = arith.divf %229, %230 : vector<8x128xf32>
    %232 = arith.mulf %200, %217 : vector<8x128xf32>
    %233 = arith.mulf %223, %225 : vector<8x128xf32>
    %234 = arith.addf %232, %233 : vector<8x128xf32>
    %235 = math.tanh %234 : vector<8x128xf32>
    %236 = arith.mulf %231, %235 : vector<8x128xf32>
    %c8_i32_61 = arith.constant 8 : i32
    %237 = arith.muli %arg1, %c8_i32_61 : i32
    %238 = arith.addi %237, %c5_i32 : i32
    %c8_i32_62 = arith.constant 8 : i32
    %239 = arith.cmpi slt, %238, %c8_i32_62 : i32
    %240 = arith.select %239, %234, %200 : vector<8x128xf32>
    %241 = arith.select %239, %236, %201 : vector<8x128xf32>
    %242 = arith.index_cast %c5_i32 : i32 to index
    %c0_63 = arith.constant 0 : index
    %c0_64 = arith.constant 0 : index
    %243 = vector.load %arg6[%242, %c0_63, %c0_64] : memref<8x8x128xf32, #tpu.memory_space<vmem>>, vector<1x8x128xf32>
    %244 = vector.shape_cast %243 : vector<1x8x128xf32> to vector<8x128xf32>
    %245 = vector.shape_cast %241 : vector<8x128xf32> to vector<1x8x128xf32>
    tpu.vector_store %arg6[%242, %c0_63, %c0_64], %245 {strides = array<i32>} : memref<8x8x128xf32, #tpu.memory_space<vmem>>, vector<1x8x128xf32>,
    %c6_i32 = arith.constant 6 : i32
    %246 = arith.index_cast %c6_i32 : i32 to index
    %c0_65 = arith.constant 0 : index
    %c0_66 = arith.constant 0 : index
    %247 = vector.load %arg2[%246, %c0_65, %c0_66] : memref<8x8x512xf32, #tpu.memory_space<vmem>>, vector<1x8x512xf32>
    %248 = vector.shape_cast %247 : vector<1x8x512xf32> to vector<8x512xf32>
    %249 = arith.truncf %241 : vector<8x128xf32> to vector<8x128xbf16>
    %cst_67 = arith.constant dense<0.000000e+00> : vector<8x512xf32>
    %250 = tpu.matmul %249, %3, %cst_67 {dimension_numbers = #tpu.dot_dimension_numbers<[1], [0], [0], [1], [0, 0, 1, 1], [], []>} : vector<8x128xbf16>, vector<128x512xbf16>, vector<8x512xf32> -> vector<8x512xf32>
    %251 = arith.addf %248, %250 : vector<8x512xf32>
    %252 = vector.extract_strided_slice %251 {offsets = [0, 0], sizes = [8, 128], strides = [1, 1]} : vector<8x512xf32> to vector<8x128xf32>
    %253 = arith.negf %252 : vector<8x128xf32>
    %254 = math.exp %253 : vector<8x128xf32>
    %cst_68 = arith.constant 1.000000e+00 : f32
    %255 = vector.broadcast %cst_68 : f32 to vector<8x128xf32>
    %256 = arith.addf %255, %254 : vector<8x128xf32>
    %257 = arith.divf %255, %256 : vector<8x128xf32>
    %258 = vector.extract_strided_slice %251 {offsets = [0, 128], sizes = [8, 128], strides = [1, 1]} : vector<8x512xf32> to vector<8x128xf32>
    %259 = arith.negf %258 : vector<8x128xf32>
    %260 = math.exp %259 : vector<8x128xf32>
    %cst_69 = arith.constant 1.000000e+00 : f32
    %261 = vector.broadcast %cst_69 : f32 to vector<8x128xf32>
    %262 = arith.addf %261, %260 : vector<8x128xf32>
    %263 = arith.divf %261, %262 : vector<8x128xf32>
    %264 = vector.extract_strided_slice %251 {offsets = [0, 256], sizes = [8, 128], strides = [1, 1]} : vector<8x512xf32> to vector<8x128xf32>
    %265 = math.tanh %264 : vector<8x128xf32>
    %266 = vector.extract_strided_slice %251 {offsets = [0, 384], sizes = [8, 128], strides = [1, 1]} : vector<8x512xf32> to vector<8x128xf32>
    %267 = arith.negf %266 : vector<8x128xf32>
    %268 = math.exp %267 : vector<8x128xf32>
    %cst_70 = arith.constant 1.000000e+00 : f32
    %269 = vector.broadcast %cst_70 : f32 to vector<8x128xf32>
    %270 = arith.addf %269, %268 : vector<8x128xf32>
    %271 = arith.divf %269, %270 : vector<8x128xf32>
    %272 = arith.mulf %240, %257 : vector<8x128xf32>
    %273 = arith.mulf %263, %265 : vector<8x128xf32>
    %274 = arith.addf %272, %273 : vector<8x128xf32>
    %275 = math.tanh %274 : vector<8x128xf32>
    %276 = arith.mulf %271, %275 : vector<8x128xf32>
    %c8_i32_71 = arith.constant 8 : i32
    %277 = arith.muli %arg1, %c8_i32_71 : i32
    %278 = arith.addi %277, %c6_i32 : i32
    %c8_i32_72 = arith.constant 8 : i32
    %279 = arith.cmpi slt, %278, %c8_i32_72 : i32
    %280 = arith.select %279, %274, %240 : vector<8x128xf32>
    %281 = arith.select %279, %276, %241 : vector<8x128xf32>
    %282 = arith.index_cast %c6_i32 : i32 to index
    %c0_73 = arith.constant 0 : index
    %c0_74 = arith.constant 0 : index
    %283 = vector.load %arg6[%282, %c0_73, %c0_74] : memref<8x8x128xf32, #tpu.memory_space<vmem>>, vector<1x8x128xf32>
    %284 = vector.shape_cast %283 : vector<1x8x128xf32> to vector<8x128xf32>
    %285 = vector.shape_cast %281 : vector<8x128xf32> to vector<1x8x128xf32>
    tpu.vector_store %arg6[%282, %c0_73, %c0_74], %285 {strides = array<i32>} : memref<8x8x128xf32, #tpu.memory_space<vmem>>, vector<1x8x128xf32>,
    %c7_i32 = arith.constant 7 : i32
    %286 = arith.index_cast %c7_i32 : i32 to index
    %c0_75 = arith.constant 0 : index
    %c0_76 = arith.constant 0 : index
    %287 = vector.load %arg2[%286, %c0_75, %c0_76] : memref<8x8x512xf32, #tpu.memory_space<vmem>>, vector<1x8x512xf32>
    %288 = vector.shape_cast %287 : vector<1x8x512xf32> to vector<8x512xf32>
    %289 = arith.truncf %281 : vector<8x128xf32> to vector<8x128xbf16>
    %cst_77 = arith.constant dense<0.000000e+00> : vector<8x512xf32>
    %290 = tpu.matmul %289, %3, %cst_77 {dimension_numbers = #tpu.dot_dimension_numbers<[1], [0], [0], [1], [0, 0, 1, 1], [], []>} : vector<8x128xbf16>, vector<128x512xbf16>, vector<8x512xf32> -> vector<8x512xf32>
    %291 = arith.addf %288, %290 : vector<8x512xf32>
    %292 = vector.extract_strided_slice %291 {offsets = [0, 0], sizes = [8, 128], strides = [1, 1]} : vector<8x512xf32> to vector<8x128xf32>
    %293 = arith.negf %292 : vector<8x128xf32>
    %294 = math.exp %293 : vector<8x128xf32>
    %cst_78 = arith.constant 1.000000e+00 : f32
    %295 = vector.broadcast %cst_78 : f32 to vector<8x128xf32>
    %296 = arith.addf %295, %294 : vector<8x128xf32>
    %297 = arith.divf %295, %296 : vector<8x128xf32>
    %298 = vector.extract_strided_slice %291 {offsets = [0, 128], sizes = [8, 128], strides = [1, 1]} : vector<8x512xf32> to vector<8x128xf32>
    %299 = arith.negf %298 : vector<8x128xf32>
    %300 = math.exp %299 : vector<8x128xf32>
    %cst_79 = arith.constant 1.000000e+00 : f32
    %301 = vector.broadcast %cst_79 : f32 to vector<8x128xf32>
    %302 = arith.addf %301, %300 : vector<8x128xf32>
    %303 = arith.divf %301, %302 : vector<8x128xf32>
    %304 = vector.extract_strided_slice %291 {offsets = [0, 256], sizes = [8, 128], strides = [1, 1]} : vector<8x512xf32> to vector<8x128xf32>
    %305 = math.tanh %304 : vector<8x128xf32>
    %306 = vector.extract_strided_slice %291 {offsets = [0, 384], sizes = [8, 128], strides = [1, 1]} : vector<8x512xf32> to vector<8x128xf32>
    %307 = arith.negf %306 : vector<8x128xf32>
    %308 = math.exp %307 : vector<8x128xf32>
    %cst_80 = arith.constant 1.000000e+00 : f32
    %309 = vector.broadcast %cst_80 : f32 to vector<8x128xf32>
    %310 = arith.addf %309, %308 : vector<8x128xf32>
    %311 = arith.divf %309, %310 : vector<8x128xf32>
    %312 = arith.mulf %280, %297 : vector<8x128xf32>
    %313 = arith.mulf %303, %305 : vector<8x128xf32>
    %314 = arith.addf %312, %313 : vector<8x128xf32>
    %315 = math.tanh %314 : vector<8x128xf32>
    %316 = arith.mulf %311, %315 : vector<8x128xf32>
    %c8_i32_81 = arith.constant 8 : i32
    %317 = arith.muli %arg1, %c8_i32_81 : i32
    %318 = arith.addi %317, %c7_i32 : i32
    %c8_i32_82 = arith.constant 8 : i32
    %319 = arith.cmpi slt, %318, %c8_i32_82 : i32
    %320 = arith.select %319, %314, %280 : vector<8x128xf32>
    %321 = arith.select %319, %316, %281 : vector<8x128xf32>
    %322 = arith.index_cast %c7_i32 : i32 to index
    %c0_83 = arith.constant 0 : index
    %c0_84 = arith.constant 0 : index
    %323 = vector.load %arg6[%322, %c0_83, %c0_84] : memref<8x8x128xf32, #tpu.memory_space<vmem>>, vector<1x8x128xf32>
    %324 = vector.shape_cast %323 : vector<1x8x128xf32> to vector<8x128xf32>
    %325 = vector.shape_cast %321 : vector<8x128xf32> to vector<1x8x128xf32>
    tpu.vector_store %arg6[%322, %c0_83, %c0_84], %325 {strides = array<i32>} : memref<8x8x128xf32, #tpu.memory_space<vmem>>, vector<1x8x128xf32>,
    %c8_i32_85 = arith.constant 8 : i32
    %c0_86 = arith.constant 0 : index
    %c0_87 = arith.constant 0 : index
    %326 = vector.load %arg9[%c0_86, %c0_87] : memref<8x128xf32, #tpu.memory_space<vmem>>, vector<8x128xf32>
    tpu.vector_store %arg9[%c0_86, %c0_87], %320 {strides = array<i32>} : memref<8x128xf32, #tpu.memory_space<vmem>>, vector<8x128xf32>,
    %c0_88 = arith.constant 0 : index
    %c0_89 = arith.constant 0 : index
    %327 = vector.load %arg10[%c0_88, %c0_89] : memref<8x128xf32, #tpu.memory_space<vmem>>, vector<8x128xf32>
    tpu.vector_store %arg10[%c0_88, %c0_89], %321 {strides = array<i32>} : memref<8x128xf32, #tpu.memory_space<vmem>>, vector<8x128xf32>,
    %c0_i32_90 = arith.constant 0 : i32
    %328 = arith.cmpi eq, %arg1, %c0_i32_90 : i32
    %329 = arith.extui %328 : i1 to i32
    %c0_i32_91 = arith.constant 0 : i32
    %330 = arith.cmpi ne, %329, %c0_i32_91 : i32
    scf.if %330 {
      %c0_92 = arith.constant 0 : index
      %c0_93 = arith.constant 0 : index
      %331 = vector.load %arg7[%c0_92, %c0_93] : memref<8x128xf32, #tpu.memory_space<vmem>>, vector<8x128xf32>
      tpu.vector_store %arg7[%c0_92, %c0_93], %320 {strides = array<i32>} : memref<8x128xf32, #tpu.memory_space<vmem>>, vector<8x128xf32>,
      %c0_94 = arith.constant 0 : index
      %c0_95 = arith.constant 0 : index
      %332 = vector.load %arg8[%c0_94, %c0_95] : memref<8x128xf32, #tpu.memory_space<vmem>>, vector<8x128xf32>
      tpu.vector_store %arg8[%c0_94, %c0_95], %321 {strides = array<i32>} : memref<8x128xf32, #tpu.memory_space<vmem>>, vector<8x128xf32>,
    } else {
    }
    return
  }
  func.func @transform_0(%arg0: i32, %arg1: i32) -> (i32, i32, i32) {
    %c0_i32 = arith.constant 0 : i32
    %c0_i32_0 = arith.constant 0 : i32
    return %arg1, %arg0, %c0_i32 : i32, i32, i32
  }
  func.func @transform_1(%arg0: i32, %arg1: i32) -> (i32, i32) {
    %c0_i32 = arith.constant 0 : i32
    %c0_i32_0 = arith.constant 0 : i32
    %c0_i32_1 = arith.constant 0 : i32
    return %c0_i32, %c0_i32_0 : i32, i32
  }
  func.func @transform_2(%arg0: i32, %arg1: i32) -> (i32, i32) {
    %c0_i32 = arith.constant 0 : i32
    %c0_i32_0 = arith.constant 0 : i32
    return %arg0, %c0_i32 : i32, i32
  }
  func.func @transform_3(%arg0: i32, %arg1: i32) -> (i32, i32) {
    %c0_i32 = arith.constant 0 : i32
    %c0_i32_0 = arith.constant 0 : i32
    return %arg0, %c0_i32 : i32, i32
  }
  func.func @transform_4(%arg0: i32, %arg1: i32) -> (i32, i32, i32) {
    %c0_i32 = arith.constant 0 : i32
    %c0_i32_0 = arith.constant 0 : i32
    return %arg1, %arg0, %c0_i32 : i32, i32, i32
  }
  func.func @transform_5(%arg0: i32, %arg1: i32) -> (i32, i32) {
    %c0_i32 = arith.constant 0 : i32
    %c0_i32_0 = arith.constant 0 : i32
    return %arg0, %c0_i32 : i32, i32
  }
  func.func @transform_6(%arg0: i32, %arg1: i32) -> (i32, i32) {
    %c0_i32 = arith.constant 0 : i32
    %c0_i32_0 = arith.constant 0 : i32
    return %arg0, %c0_i32 : i32, i32
  }
}

</mosaic_0001>

<llo_original>
// kernel: tpu_custom_call.1
$region0: #{tpu_custom_call.1}
  #allocation0 [shape = 'u32[]', space=smem, size = 0x4, offset = 0x4, fixed_abs, tag = 'smem constant byte address 0x4 - core index']
  #allocation1 [shape = 'u32[144,128]{1,0:T(1,128)}', space=vmem, size = 0x12000, scoped, tag = 'internal scratch']
  #allocation2 [shape = 'f32[8,128]{1,0:T(8,128)}', space=vmem, size = 0x1000, scoped, tag = 'scratch operand']
  #allocation3 [shape = 'f32[8,128]{1,0:T(8,128)}', space=vmem, size = 0x1000, scoped, tag = 'scratch operand']
  %s0 = inlined_call_operand.hbm [shape: f32[8,8,512], index: 0, kind: input, shape index: {}]
  %s1 = inlined_call_operand.hbm [shape: bf16[128,512], index: 1, kind: input, shape index: {}]
  %s2 = inlined_call_operand.hbm [shape: f32[8,128], index: 2, kind: input, shape index: {}]
  %s3 = inlined_call_operand.vmem [shape: f32[8,128], index: 3, kind: input, shape index: {}]
  %s4 = inlined_call_operand.hbm [shape: f32[8,8,128], index: 4, kind: output, shape index: {0}]
  %s5 = inlined_call_operand.hbm [shape: f32[8,128], index: 5, kind: output, shape index: {1}]
  %s6 = inlined_call_operand.hbm [shape: f32[8,128], index: 6, kind: output, shape index: {2}]
  %7 = xla_tuple %s4, %s5, %s6
  %s8 = sld [smem:[#allocation0]]
  $region62: #{tpu_custom_call.1} parent=0
    _
  %s10 = ssub.s32 1, %s8
  %s11 = scalar_select 0, %s10, %s8
  $region1: #{tpu_custom_call.1} parent=0
    #allocation4 [shape = 'u8[131072]{0}', space=vmem, size = 0x20000, scoped, tag = 'input window, operand 0, single buffered']
    #allocation5 [shape = 's32[1]{0}', space=sflag, size = 0x4, scoped, tag = 'scoped memory for tpu_custom_call.1']
    #allocation6 [shape = 's32[1]{0}', space=sflag, size = 0x4, scoped, tag = 'scoped memory for tpu_custom_call.1']
    #allocation7 [shape = 'u8[131072]{0}', space=vmem, size = 0x20000, scoped, tag = 'input window, operand 1, single buffered']
    #allocation8 [shape = 's32[1]{0}', space=sflag, size = 0x4, scoped, tag = 'scoped memory for tpu_custom_call.1']
    #allocation9 [shape = 'u8[4096]{0}', space=vmem, size = 0x1000, scoped, tag = 'input window, operand 2, single buffered']
    #allocation10 [shape = 'u8[32768]{0}', space=vmem, size = 0x8000, scoped, tag = 'output window, operand 0, single buffered']
    #allocation11 [shape = 'u8[4096]{0}', space=vmem, size = 0x1000, scoped, tag = 'output window, operand 1, single buffered']
    #allocation12 [shape = 's32[1]{0}', space=sflag, size = 0x4, scoped, tag = 'scoped memory for tpu_custom_call.1']
    #allocation13 [shape = 'u8[4096]{0}', space=vmem, size = 0x1000, scoped, tag = 'output window, operand 2, single buffered']
    %12 = vsyncpa [#allocation5], 0
    %13 = vsyncpa [#allocation8], 0
    %14 = vsyncpa [#allocation6], 0
    %15 = vsyncpa [#allocation12], 0
    // Predicated region
    $region2: #{tpu_custom_call.1} parent=1 // pred_check
      _
    $region3: #{tpu_custom_call.1} parent=1 // pred_check_branch
      %17 = sbr.rel (0) target = $region5
    $region4: #{tpu_custom_call.1} parent=1 // pred_region
      %s19 = ssub.s32 4096, 4096
      %20 = vsyncadd [#allocation5], %s19
      %s21 = sshll.u32 [#allocation4], 4
      %s22 = int_to_ptr.vmem [resolvable:$true] %s21
      %27 = dma.hbm_to_vmem [thread:$0]  %s0, 4096, %s22, [#allocation5], 512, 512, 32
    $region5: #{tpu_custom_call.1} parent=1 // pred_fallthru
      _
    // Predicated region
    $region6: #{tpu_custom_call.1} parent=1 // pred_check
      _
    $region7: #{tpu_custom_call.1} parent=1 // pred_check_branch
      %29 = sbr.rel (0) target = $region9
    $region8: #{tpu_custom_call.1} parent=1 // pred_region
      %s31 = ssub.s32 4096, 4096
      %32 = vsyncadd [#allocation8], %s31
      %s33 = sshll.u32 [#allocation7], 4
      %s34 = int_to_ptr.vmem [resolvable:$true] %s33
      %39 = dma.hbm_to_vmem [thread:$0]  %s1, 4096, %s34, [#allocation8], 256, 256, 16
    $region9: #{tpu_custom_call.1} parent=1 // pred_fallthru
      _
    // Predicated region
    $region10: #{tpu_custom_call.1} parent=1 // pred_check
      _
    $region11: #{tpu_custom_call.1} parent=1 // pred_check_branch
      %41 = sbr.rel (0) target = $region13
    $region12: #{tpu_custom_call.1} parent=1 // pred_region
      %s43 = ssub.s32 128, 128
      %44 = vsyncadd [#allocation8], %s43
      %s46 = sshll.u32 [#allocation9], 4
      %s47 = int_to_ptr.vmem [resolvable:$true] %s46
      %49 = dma.hbm_to_vmem [thread:$0]  %s2, 128, %s47, [#allocation8]
    $region13: #{tpu_custom_call.1} parent=1 // pred_fallthru
      _
    // Predicated region
    $region14: #{tpu_custom_call.1} parent=1 // pred_check
      _
    $region15: #{tpu_custom_call.1} parent=1 // pred_check_branch
      %51 = sbr.rel (0) target = $region17
    $region16: #{tpu_custom_call.1} parent=1 // pred_region
      _
    $region17: #{tpu_custom_call.1} parent=1 // pred_fallthru
      _
    // Predicated region
    $region18: #{tpu_custom_call.1} parent=1 // pred_check
      _
    $region19: #{tpu_custom_call.1} parent=1 // pred_check_branch
      %53 = sbr.rel (0) target = $region21
    $region20: #{tpu_custom_call.1} parent=1 // pred_region
      %54 = dma.done [#allocation5], 4096
    $region21: #{tpu_custom_call.1} parent=1 // pred_fallthru
      _
    // Predicated region
    $region22: #{tpu_custom_call.1} parent=1 // pred_check
      _
    $region23: #{tpu_custom_call.1} parent=1 // pred_check_branch
      %56 = sbr.rel (0) target = $region25
    $region24: #{tpu_custom_call.1} parent=1 // pred_region
      %57 = dma.done [#allocation8], 4096
    $region25: #{tpu_custom_call.1} parent=1 // pred_fallthru
      _
    // Predicated region
    $region26: #{tpu_custom_call.1} parent=1 // pred_check
      _
    $region27: #{tpu_custom_call.1} parent=1 // pred_check_branch
      %59 = sbr.rel (0) target = $region29
    $region28: #{tpu_custom_call.1} parent=1 // pred_region
      %60 = dma.done [#allocation8], 128
    $region29: #{tpu_custom_call.1} parent=1 // pred_fallthru
      _
    %p62 = scmp.eq.s32.totalorder 0, 0
    // Predicated region
    $region30: #{tpu_custom_call.1} parent=1 // pred_check
      %p63 = pneg %p62
    $region31: #{tpu_custom_call.1} parent=1 // pred_check_branch
      %65 = sbr.rel (%p63) target = $region33
    $region32: #{tpu_custom_call.1} parent=1 // pred_region
      %v66 = vld [vmem:[#allocation9] sm:$0xff]
      %67 = vst [vmem:[#allocation2] sm:$0xff] %v66
      %v68 = vld [vmem:[%s3] sm:$0xff]
      %69 = vst [vmem:[#allocation3] sm:$0xff] %v68
    $region33: #{tpu_custom_call.1} parent=1 // pred_fallthru
      _
    %v70 = vld [vmem:[#allocation7] sm:$0xff]
    %v71 = vld [vmem:[#allocation7 + $0x8] sm:$0xff]
    %v72 = vld [vmem:[#allocation7 + $0x10] sm:$0xff]
    %v73 = vld [vmem:[#allocation7 + $0x18] sm:$0xff]
    %v74 = vld [vmem:[#allocation7 + $0x20] sm:$0xff]
    %v75 = vld [vmem:[#allocation7 + $0x28] sm:$0xff]
    %v76 = vld [vmem:[#allocation7 + $0x30] sm:$0xff]
    %v77 = vld [vmem:[#allocation7 + $0x38] sm:$0xff]
    %v78 = vld [vmem:[#allocation7 + $0x40] sm:$0xff]
    %v79 = vld [vmem:[#allocation7 + $0x48] sm:$0xff]
    %v80 = vld [vmem:[#allocation7 + $0x50] sm:$0xff]
    %v81 = vld [vmem:[#allocation7 + $0x58] sm:$0xff]
    %v82 = vld [vmem:[#allocation7 + $0x60] sm:$0xff]
    %v83 = vld [vmem:[#allocation7 + $0x68] sm:$0xff]
    %v84 = vld [vmem:[#allocation7 + $0x70] sm:$0xff]
    %v85 = vld [vmem:[#allocation7 + $0x78] sm:$0xff]
    %v86 = vld [vmem:[#allocation7 + $0x80] sm:$0xff]
    %v87 = vld [vmem:[#allocation7 + $0x88] sm:$0xff]
    %v88 = vld [vmem:[#allocation7 + $0x90] sm:$0xff]
    %v89 = vld [vmem:[#allocation7 + $0x98] sm:$0xff]
    %v90 = vld [vmem:[#allocation7 + $0xa0] sm:$0xff]
    %v91 = vld [vmem:[#allocation7 + $0xa8] sm:$0xff]
    %v92 = vld [vmem:[#allocation7 + $0xb0] sm:$0xff]
    %v93 = vld [vmem:[#allocation7 + $0xb8] sm:$0xff]
    %v94 = vld [vmem:[#allocation7 + $0xc0] sm:$0xff]
    %v95 = vld [vmem:[#allocation7 + $0xc8] sm:$0xff]
    %v96 = vld [vmem:[#allocation7 + $0xd0] sm:$0xff]
    %v97 = vld [vmem:[#allocation7 + $0xd8] sm:$0xff]
    %v98 = vld [vmem:[#allocation7 + $0xe0] sm:$0xff]
    %v99 = vld [vmem:[#allocation7 + $0xe8] sm:$0xff]
    %v100 = vld [vmem:[#allocation7 + $0xf0] sm:$0xff]
    %v101 = vld [vmem:[#allocation7 + $0xf8] sm:$0xff]
    %v102 = vld [vmem:[#allocation2] sm:$0xff]
    %v103 = vld [vmem:[#allocation3] sm:$0xff]
    %v104 = vld [vmem:[#allocation4] sm:$0xff]
    %v105 = vld [vmem:[#allocation4 + $0x8] sm:$0xff]
    %v106 = vld [vmem:[#allocation4 + $0x10] sm:$0xff]
    %v107 = vld [vmem:[#allocation4 + $0x18] sm:$0xff]
    %v108 = vpack.c.bf16 %v103, %v103
    %v141 = vunpack.c.l.b16 %v70
    %v142 = vunpack.c.h.b16 %v70
    %v143 = vunpack.c.l.b16 %v71
    %v144 = vunpack.c.h.b16 %v71
    %v145 = vunpack.c.l.b16 %v72
    %v146 = vunpack.c.h.b16 %v72
    %v147 = vunpack.c.l.b16 %v73
    %v148 = vunpack.c.h.b16 %v73
    %v149 = vunpack.c.l.b16 %v74
    %v150 = vunpack.c.h.b16 %v74
    %v151 = vunpack.c.l.b16 %v75
    %v152 = vunpack.c.h.b16 %v75
    %v153 = vunpack.c.l.b16 %v76
    %v154 = vunpack.c.h.b16 %v76
    %v155 = vunpack.c.l.b16 %v77
    %v156 = vunpack.c.h.b16 %v77
    %v157 = vunpack.c.l.b16 %v78
    %v158 = vunpack.c.h.b16 %v78
    %v159 = vunpack.c.l.b16 %v79
    %v160 = vunpack.c.h.b16 %v79
    %v161 = vunpack.c.l.b16 %v80
    %v162 = vunpack.c.h.b16 %v80
    %v163 = vunpack.c.l.b16 %v81
    %v164 = vunpack.c.h.b16 %v81
    %v165 = vunpack.c.l.b16 %v82
    %v166 = vunpack.c.h.b16 %v82
    %v167 = vunpack.c.l.b16 %v83
    %v168 = vunpack.c.h.b16 %v83
    %v169 = vunpack.c.l.b16 %v84
    %v170 = vunpack.c.h.b16 %v84
    %v171 = vunpack.c.l.b16 %v85
    %v172 = vunpack.c.h.b16 %v85
    %v173 = vunpack.c.l.b16 %v86
    %v174 = vunpack.c.h.b16 %v86
    %v175 = vunpack.c.l.b16 %v87
    %v176 = vunpack.c.h.b16 %v87
    %v177 = vunpack.c.l.b16 %v88
    %v178 = vunpack.c.h.b16 %v88
    %v179 = vunpack.c.l.b16 %v89
    %v180 = vunpack.c.h.b16 %v89
    %v181 = vunpack.c.l.b16 %v90
    %v182 = vunpack.c.h.b16 %v90
    %v183 = vunpack.c.l.b16 %v91
    %v184 = vunpack.c.h.b16 %v91
    %v185 = vunpack.c.l.b16 %v92
    %v186 = vunpack.c.h.b16 %v92
    %v187 = vunpack.c.l.b16 %v93
    %v188 = vunpack.c.h.b16 %v93
    %v189 = vunpack.c.l.b16 %v94
    %v190 = vunpack.c.h.b16 %v94
    %v191 = vunpack.c.l.b16 %v95
    %v192 = vunpack.c.h.b16 %v95
    %v193 = vunpack.c.l.b16 %v96
    %v194 = vunpack.c.h.b16 %v96
    %v195 = vunpack.c.l.b16 %v97
    %v196 = vunpack.c.h.b16 %v97
    %v197 = vunpack.c.l.b16 %v98
    %v198 = vunpack.c.h.b16 %v98
    %v199 = vunpack.c.l.b16 %v99
    %v200 = vunpack.c.h.b16 %v99
    %v201 = vunpack.c.l.b16 %v100
    %v202 = vunpack.c.h.b16 %v100
    %v203 = vunpack.c.l.b16 %v101
    %v204 = vunpack.c.h.b16 %v101
    %v205 = vpack.c.b16 %v145, %v141
    %v206 = vpack.c.b16 %v146, %v142
    %v207 = vpack.c.b16 %v147, %v143
    %v208 = vpack.c.b16 %v148, %v144
    %v209 = vpack.c.b16 %v153, %v149
    %v210 = vpack.c.b16 %v154, %v150
    %v211 = vpack.c.b16 %v155, %v151
    %v212 = vpack.c.b16 %v156, %v152
    %v213 = vpack.c.b16 %v161, %v157
    %v214 = vpack.c.b16 %v162, %v158
    %v215 = vpack.c.b16 %v163, %v159
    %v216 = vpack.c.b16 %v164, %v160
    %v217 = vpack.c.b16 %v169, %v165
    %v218 = vpack.c.b16 %v170, %v166
    %v219 = vpack.c.b16 %v171, %v167
    %v220 = vpack.c.b16 %v172, %v168
    %v221 = vpack.c.b16 %v177, %v173
    %v222 = vpack.c.b16 %v178, %v174
    %v223 = vpack.c.b16 %v179, %v175
    %v224 = vpack.c.b16 %v180, %v176
    %v225 = vpack.c.b16 %v185, %v181
    %v226 = vpack.c.b16 %v186, %v182
    %v227 = vpack.c.b16 %v187, %v183
    %v228 = vpack.c.b16 %v188, %v184
    %v229 = vpack.c.b16 %v193, %v189
    %v230 = vpack.c.b16 %v194, %v190
    %v231 = vpack.c.b16 %v195, %v191
    %v232 = vpack.c.b16 %v196, %v192
    %v233 = vpack.c.b16 %v201, %v197
    %v234 = vpack.c.b16 %v202, %v198
    %v235 = vpack.c.b16 %v203, %v199
    %v236 = vpack.c.b16 %v204, %v200
    %269 = vmatprep.subr.bf16.mxu0 %v206
    %270 = vmatpush1.bf16.msra.mxu0 %v205
    %271 = vmatprep.subr.bf16.mxu0 %v210
    %272 = vmatpush1.bf16.msra.mxu0 %v209
    %273 = vmatprep.subr.bf16.mxu0 %v214
    %274 = vmatpush1.bf16.msra.mxu0 %v213
    %275 = vmatprep.subr.bf16.mxu0 %v218
    %276 = vmatpush1.bf16.msra.mxu0 %v217
    %277 = vmatprep.subr.bf16.mxu0 %v222
    %278 = vmatpush1.bf16.msra.mxu0 %v221
    %279 = vmatprep.subr.bf16.mxu0 %v226
    %280 = vmatpush1.bf16.msra.mxu0 %v225
    %281 = vmatprep.subr.bf16.mxu0 %v230
    %282 = vmatpush1.bf16.msra.mxu0 %v229
    %283 = vmatprep.subr.bf16.mxu0 %v234
    %284 = vmatpush1.bf16.msra.mxu0 %v233
    %285 = vmatprep.subr.bf16.mxu0 0
    %286 = vmatpush1.bf16.msra.mxu0 0
    %287 = vmatprep.subr.bf16.mxu0 0
    %288 = vmatpush1.bf16.msra.mxu0 0
    %289 = vmatprep.subr.bf16.mxu0 0
    %290 = vmatpush1.bf16.msra.mxu0 0
    %291 = vmatprep.subr.bf16.mxu0 0
    %292 = vmatpush1.bf16.msra.mxu0 0
    %293 = vmatprep.subr.bf16.mxu0 0
    %294 = vmatpush1.bf16.msra.mxu0 0
    %295 = vmatprep.subr.bf16.mxu0 0
    %296 = vmatpush1.bf16.msra.mxu0 0
    %297 = vmatprep.subr.bf16.mxu0 0
    %298 = vmatpush1.bf16.msra.mxu0 0
    %299 = vmatprep.subr.bf16.mxu0 0
    %300 = vmatpush1.bf16.msra.mxu0 0
    %301 = vmatprep.mubr.bf16.mxu0 0
    %302 = vmatmul.mubr.bf16.gmra.mrb[0].mxu0 %v108
    %v303 = vpop.f32.mrb[0].mxu0
    %v304 = vadd.f32 0.0, %v303
    %v305 = vpop.f32.mrb[0].mxu0
    %v306 = vadd.f32 0.0, %v305
    %v307 = vpop.f32.mrb[0].mxu0
    %v308 = vpop.f32.mrb[0].mxu0
    %309 = vdwg.mxu0
    %310 = vmatprep.subr.bf16.mxu0 %v208
    %311 = vmatpush1.bf16.msra.mxu0 %v207
    %312 = vmatprep.subr.bf16.mxu0 %v212
    %313 = vmatpush1.bf16.msra.mxu0 %v211
    %314 = vmatprep.subr.bf16.mxu0 %v216
    %315 = vmatpush1.bf16.msra.mxu0 %v215
    %316 = vmatprep.subr.bf16.mxu0 %v220
    %317 = vmatpush1.bf16.msra.mxu0 %v219
    %318 = vmatprep.subr.bf16.mxu0 %v224
    %319 = vmatpush1.bf16.msra.mxu0 %v223
    %320 = vmatprep.subr.bf16.mxu0 %v228
    %321 = vmatpush1.bf16.msra.mxu0 %v227
    %322 = vmatprep.subr.bf16.mxu0 %v232
    %323 = vmatpush1.bf16.msra.mxu0 %v231
    %324 = vmatprep.subr.bf16.mxu0 %v236
    %325 = vmatpush1.bf16.msra.mxu0 %v235
    %326 = vmatprep.subr.bf16.mxu0 0
    %327 = vmatpush1.bf16.msra.mxu0 0
    %328 = vmatprep.subr.bf16.mxu0 0
    %329 = vmatpush1.bf16.msra.mxu0 0
    %330 = vmatprep.subr.bf16.mxu0 0
    %331 = vmatpush1.bf16.msra.mxu0 0
    %332 = vmatprep.subr.bf16.mxu0 0
    %333 = vmatpush1.bf16.msra.mxu0 0
    %334 = vmatprep.subr.bf16.mxu0 0
    %335 = vmatpush1.bf16.msra.mxu0 0
    %336 = vmatprep.subr.bf16.mxu0 0
    %337 = vmatpush1.bf16.msra.mxu0 0
    %338 = vmatprep.subr.bf16.mxu0 0
    %339 = vmatpush1.bf16.msra.mxu0 0
    %340 = vmatprep.subr.bf16.mxu0 0
    %341 = vmatpush1.bf16.msra.mxu0 0
    %342 = vmatprep.mubr.bf16.mxu0 0
    %343 = vmatmul.mubr.bf16.gmra.mrb[0].mxu0 %v108
    %v344 = vpop.f32.mrb[0].mxu0
    %v345 = vadd.f32 0.0, %v344
    %v346 = vpop.f32.mrb[0].mxu0
    %v347 = vadd.f32 0.0, %v346
    %v348 = vpop.f32.mrb[0].mxu0
    %v349 = vpop.f32.mrb[0].mxu0
    %350 = vdwg.mxu0
    %v351 = vadd.f32 %v104, %v304
    %v352 = vadd.f32 %v105, %v306
    %v353 = vadd.f32 %v106, %v345
    %v354 = vadd.f32 %v107, %v347
    %v355 = vxor.u32 %v351, 2147483648
    %v356 = vmul.f32 %v355, 1.442695
    %v357 = vpow.pop %v356
    %v358 = vadd.f32 %v357, 1.0
    %v359 = vrcp.pop %v358
    %v360 = vmul.f32 1.0, %v359
    %v361 = vxor.u32 %v352, 2147483648
    %v362 = vmul.f32 %v361, 1.442695
    %v363 = vpow.pop %v362
    %v364 = vadd.f32 %v363, 1.0
    %v365 = vrcp.pop %v364
    %v366 = vmul.f32 1.0, %v365
    %v367 = vtanh.pop %v353
    %v368 = vxor.u32 %v354, 2147483648
    %v369 = vmul.f32 %v368, 1.442695
    %v370 = vpow.pop %v369
    %v371 = vadd.f32 %v370, 1.0
    %v372 = vrcp.pop %v371
    %v373 = vmul.f32 1.0, %v372
    %v374 = vmul.f32 %v102, %v360
    %v375 = vmul.f32 %v366, %v367
    %v376 = vadd.f32 %v374, %v375
    %v377 = vtanh.pop %v376
    %v378 = vmul.f32 %v373, %v377
    %s379 = smul.u32 0, 8
    %p380 = scmp.lt.s32.totalorder %s379, 8
    %s381 = scalar_select %p380, 1, 0
    %v382 = vstv %s381
    %vm383 = vcmp.eq.s32.totalorder %v382, 1
    %v384 = vsel %vm383, %v376, %v102
    %v385 = vsel %vm383, %v378, %v103
    %386 = vst [vmem:[#allocation10] sm:$0xff] %v385
    %s387 = scalar_lea.vmem [#allocation4], 32
    %v388 = vld [vmem:[%s387] sm:$0xff]
    %v389 = vld [vmem:[%s387 + $0x8] sm:$0xff]
    %v390 = vld [vmem:[%s387 + $0x10] sm:$0xff]
    %v391 = vld [vmem:[%s387 + $0x18] sm:$0xff]
    %v392 = vpack.c.bf16 %v385, %v385
    %393 = vmatprep.subr.bf16.mxu0 %v206
    %394 = vmatpush1.bf16.msra.mxu0 %v205
    %395 = vmatprep.subr.bf16.mxu0 %v210
    %396 = vmatpush1.bf16.msra.mxu0 %v209
    %397 = vmatprep.subr.bf16.mxu0 %v214
    %398 = vmatpush1.bf16.msra.mxu0 %v213
    %399 = vmatprep.subr.bf16.mxu0 %v218
    %400 = vmatpush1.bf16.msra.mxu0 %v217
    %401 = vmatprep.subr.bf16.mxu0 %v222
    %402 = vmatpush1.bf16.msra.mxu0 %v221
    %403 = vmatprep.subr.bf16.mxu0 %v226
    %404 = vmatpush1.bf16.msra.mxu0 %v225
    %405 = vmatprep.subr.bf16.mxu0 %v230
    %406 = vmatpush1.bf16.msra.mxu0 %v229
    %407 = vmatprep.subr.bf16.mxu0 %v234
    %408 = vmatpush1.bf16.msra.mxu0 %v233
    %409 = vmatprep.subr.bf16.mxu0 0
    %410 = vmatpush1.bf16.msra.mxu0 0
    %411 = vmatprep.subr.bf16.mxu0 0
    %412 = vmatpush1.bf16.msra.mxu0 0
    %413 = vmatprep.subr.bf16.mxu0 0
    %414 = vmatpush1.bf16.msra.mxu0 0
    %415 = vmatprep.subr.bf16.mxu0 0
    %416 = vmatpush1.bf16.msra.mxu0 0
    %417 = vmatprep.subr.bf16.mxu0 0
    %418 = vmatpush1.bf16.msra.mxu0 0
    %419 = vmatprep.subr.bf16.mxu0 0
    %420 = vmatpush1.bf16.msra.mxu0 0
    %421 = vmatprep.subr.bf16.mxu0 0
    %422 = vmatpush1.bf16.msra.mxu0 0
    %423 = vmatprep.subr.bf16.mxu0 0
    %424 = vmatpush1.bf16.msra.mxu0 0
    %425 = vmatprep.mubr.bf16.mxu0 0
    %426 = vmatmul.mubr.bf16.gmra.mrb[0].mxu0 %v392
    %v427 = vpop.f32.mrb[0].mxu0
    %v428 = vadd.f32 0.0, %v427
    %v429 = vpop.f32.mrb[0].mxu0
    %v430 = vadd.f32 0.0, %v429
    %v431 = vpop.f32.mrb[0].mxu0
    %v432 = vpop.f32.mrb[0].mxu0
    %433 = vdwg.mxu0
    %434 = vmatprep.subr.bf16.mxu0 %v208
    %435 = vmatpush1.bf16.msra.mxu0 %v207
    %436 = vmatprep.subr.bf16.mxu0 %v212
    %437 = vmatpush1.bf16.msra.mxu0 %v211
    %438 = vmatprep.subr.bf16.mxu0 %v216
    %439 = vmatpush1.bf16.msra.mxu0 %v215
    %440 = vmatprep.subr.bf16.mxu0 %v220
    %441 = vmatpush1.bf16.msra.mxu0 %v219
    %442 = vmatprep.subr.bf16.mxu0 %v224
    %443 = vmatpush1.bf16.msra.mxu0 %v223
    %444 = vmatprep.subr.bf16.mxu0 %v228
    %445 = vmatpush1.bf16.msra.mxu0 %v227
    %446 = vmatprep.subr.bf16.mxu0 %v232
    %447 = vmatpush1.bf16.msra.mxu0 %v231
    %448 = vmatprep.subr.bf16.mxu0 %v236
    %449 = vmatpush1.bf16.msra.mxu0 %v235
    %450 = vmatprep.subr.bf16.mxu0 0
    %451 = vmatpush1.bf16.msra.mxu0 0
    %452 = vmatprep.subr.bf16.mxu0 0
    %453 = vmatpush1.bf16.msra.mxu0 0
    %454 = vmatprep.subr.bf16.mxu0 0
    %455 = vmatpush1.bf16.msra.mxu0 0
    %456 = vmatprep.subr.bf16.mxu0 0
    %457 = vmatpush1.bf16.msra.mxu0 0
    %458 = vmatprep.subr.bf16.mxu0 0
    %459 = vmatpush1.bf16.msra.mxu0 0
    %460 = vmatprep.subr.bf16.mxu0 0
    %461 = vmatpush1.bf16.msra.mxu0 0
    %462 = vmatprep.subr.bf16.mxu0 0
    %463 = vmatpush1.bf16.msra.mxu0 0
    %464 = vmatprep.subr.bf16.mxu0 0
    %465 = vmatpush1.bf16.msra.mxu0 0
    %466 = vmatprep.mubr.bf16.mxu0 0
    %467 = vmatmul.mubr.bf16.gmra.mrb[0].mxu0 %v392
    %v468 = vpop.f32.mrb[0].mxu0
    %v469 = vadd.f32 0.0, %v468
    %v470 = vpop.f32.mrb[0].mxu0
    %v471 = vadd.f32 0.0, %v470
    %v472 = vpop.f32.mrb[0].mxu0
    %v473 = vpop.f32.mrb[0].mxu0
    %474 = vdwg.mxu0
    %v475 = vadd.f32 %v388, %v428
    %v476 = vadd.f32 %v389, %v430
    %v477 = vadd.f32 %v390, %v469
    %v478 = vadd.f32 %v391, %v471
    %v479 = vxor.u32 %v475, 2147483648
    %v480 = vmul.f32 %v479, 1.442695
    %v481 = vpow.pop %v480
    %v482 = vadd.f32 %v481, 1.0
    %v483 = vrcp.pop %v482
    %v484 = vmul.f32 1.0, %v483
    %v485 = vxor.u32 %v476, 2147483648
    %v486 = vmul.f32 %v485, 1.442695
    %v487 = vpow.pop %v486
    %v488 = vadd.f32 %v487, 1.0
    %v489 = vrcp.pop %v488
    %v490 = vmul.f32 1.0, %v489
    %v491 = vtanh.pop %v477
    %v492 = vxor.u32 %v478, 2147483648
    %v493 = vmul.f32 %v492, 1.442695
    %v494 = vpow.pop %v493
    %v495 = vadd.f32 %v494, 1.0
    %v496 = vrcp.pop %v495
    %v497 = vmul.f32 1.0, %v496
    %v498 = vmul.f32 %v384, %v484
    %v499 = vmul.f32 %v490, %v491
    %v500 = vadd.f32 %v498, %v499
    %v501 = vtanh.pop %v500
    %v502 = vmul.f32 %v497, %v501
    %s503 = sadd.s32 %s379, 1
    %p504 = scmp.lt.s32.totalorder %s503, 8
    %s505 = scalar_select %p504, 1, 0
    %v506 = vstv %s505
    %vm507 = vcmp.eq.s32.totalorder %v506, 1
    %v508 = vsel %vm507, %v500, %v384
    %v509 = vsel %vm507, %v502, %v385
    %s510 = scalar_lea.vmem [#allocation10], 8
    %511 = vst [vmem:[%s510] sm:$0xff] %v509
    %s512 = scalar_lea.vmem [#allocation4], 64
    %v513 = vld [vmem:[%s512] sm:$0xff]
    %v514 = vld [vmem:[%s512 + $0x8] sm:$0xff]
    %v515 = vld [vmem:[%s512 + $0x10] sm:$0xff]
    %v516 = vld [vmem:[%s512 + $0x18] sm:$0xff]
    %v517 = vpack.c.bf16 %v509, %v509
    %518 = vmatprep.subr.bf16.mxu0 %v206
    %519 = vmatpush1.bf16.msra.mxu0 %v205
    %520 = vmatprep.subr.bf16.mxu0 %v210
    %521 = vmatpush1.bf16.msra.mxu0 %v209
    %522 = vmatprep.subr.bf16.mxu0 %v214
    %523 = vmatpush1.bf16.msra.mxu0 %v213
    %524 = vmatprep.subr.bf16.mxu0 %v218
    %525 = vmatpush1.bf16.msra.mxu0 %v217
    %526 = vmatprep.subr.bf16.mxu0 %v222
    %527 = vmatpush1.bf16.msra.mxu0 %v221
    %528 = vmatprep.subr.bf16.mxu0 %v226
    %529 = vmatpush1.bf16.msra.mxu0 %v225
    %530 = vmatprep.subr.bf16.mxu0 %v230
    %531 = vmatpush1.bf16.msra.mxu0 %v229
    %532 = vmatprep.subr.bf16.mxu0 %v234
    %533 = vmatpush1.bf16.msra.mxu0 %v233
    %534 = vmatprep.subr.bf16.mxu0 0
    %535 = vmatpush1.bf16.msra.mxu0 0
    %536 = vmatprep.subr.bf16.mxu0 0
    %537 = vmatpush1.bf16.msra.mxu0 0
    %538 = vmatprep.subr.bf16.mxu0 0
    %539 = vmatpush1.bf16.msra.mxu0 0
    %540 = vmatprep.subr.bf16.mxu0 0
    %541 = vmatpush1.bf16.msra.mxu0 0
    %542 = vmatprep.subr.bf16.mxu0 0
    %543 = vmatpush1.bf16.msra.mxu0 0
    %544 = vmatprep.subr.bf16.mxu0 0
    %545 = vmatpush1.bf16.msra.mxu0 0
    %546 = vmatprep.subr.bf16.mxu0 0
    %547 = vmatpush1.bf16.msra.mxu0 0
    %548 = vmatprep.subr.bf16.mxu0 0
    %549 = vmatpush1.bf16.msra.mxu0 0
    %550 = vmatprep.mubr.bf16.mxu0 0
    %551 = vmatmul.mubr.bf16.gmra.mrb[0].mxu0 %v517
    %v552 = vpop.f32.mrb[0].mxu0
    %v553 = vadd.f32 0.0, %v552
    %v554 = vpop.f32.mrb[0].mxu0
    %v555 = vadd.f32 0.0, %v554
    %v556 = vpop.f32.mrb[0].mxu0
    %v557 = vpop.f32.mrb[0].mxu0
    %558 = vdwg.mxu0
    %559 = vmatprep.subr.bf16.mxu0 %v208
    %560 = vmatpush1.bf16.msra.mxu0 %v207
    %561 = vmatprep.subr.bf16.mxu0 %v212
    %562 = vmatpush1.bf16.msra.mxu0 %v211
    %563 = vmatprep.subr.bf16.mxu0 %v216
    %564 = vmatpush1.bf16.msra.mxu0 %v215
    %565 = vmatprep.subr.bf16.mxu0 %v220
    %566 = vmatpush1.bf16.msra.mxu0 %v219
    %567 = vmatprep.subr.bf16.mxu0 %v224
    %568 = vmatpush1.bf16.msra.mxu0 %v223
    %569 = vmatprep.subr.bf16.mxu0 %v228
    %570 = vmatpush1.bf16.msra.mxu0 %v227
    %571 = vmatprep.subr.bf16.mxu0 %v232
    %572 = vmatpush1.bf16.msra.mxu0 %v231
    %573 = vmatprep.subr.bf16.mxu0 %v236
    %574 = vmatpush1.bf16.msra.mxu0 %v235
    %575 = vmatprep.subr.bf16.mxu0 0
    %576 = vmatpush1.bf16.msra.mxu0 0
    %577 = vmatprep.subr.bf16.mxu0 0
    %578 = vmatpush1.bf16.msra.mxu0 0
    %579 = vmatprep.subr.bf16.mxu0 0
    %580 = vmatpush1.bf16.msra.mxu0 0
    %581 = vmatprep.subr.bf16.mxu0 0
    %582 = vmatpush1.bf16.msra.mxu0 0
    %583 = vmatprep.subr.bf16.mxu0 0
    %584 = vmatpush1.bf16.msra.mxu0 0
    %585 = vmatprep.subr.bf16.mxu0 0
    %586 = vmatpush1.bf16.msra.mxu0 0
    %587 = vmatprep.subr.bf16.mxu0 0
    %588 = vmatpush1.bf16.msra.mxu0 0
    %589 = vmatprep.subr.bf16.mxu0 0
    %590 = vmatpush1.bf16.msra.mxu0 0
    %591 = vmatprep.mubr.bf16.mxu0 0
    %592 = vmatmul.mubr.bf16.gmra.mrb[0].mxu0 %v517
    %v593 = vpop.f32.mrb[0].mxu0
    %v594 = vadd.f32 0.0, %v593
    %v595 = vpop.f32.mrb[0].mxu0
    %v596 = vadd.f32 0.0, %v595
    %v597 = vpop.f32.mrb[0].mxu0
    %v598 = vpop.f32.mrb[0].mxu0
    %599 = vdwg.mxu0
    %v600 = vadd.f32 %v513, %v553
    %v601 = vadd.f32 %v514, %v555
    %v602 = vadd.f32 %v515, %v594
    %v603 = vadd.f32 %v516, %v596
    %v604 = vxor.u32 %v600, 2147483648
    %v605 = vmul.f32 %v604, 1.442695
    %v606 = vpow.pop %v605
    %v607 = vadd.f32 %v606, 1.0
    %v608 = vrcp.pop %v607
    %v609 = vmul.f32 1.0, %v608
    %v610 = vxor.u32 %v601, 2147483648
    %v611 = vmul.f32 %v610, 1.442695
    %v612 = vpow.pop %v611
    %v613 = vadd.f32 %v612, 1.0
    %v614 = vrcp.pop %v613
    %v615 = vmul.f32 1.0, %v614
    %v616 = vtanh.pop %v602
    %v617 = vxor.u32 %v603, 2147483648
    %v618 = vmul.f32 %v617, 1.442695
    %v619 = vpow.pop %v618
    %v620 = vadd.f32 %v619, 1.0
    %v621 = vrcp.pop %v620
    %v622 = vmul.f32 1.0, %v621
    %v623 = vmul.f32 %v508, %v609
    %v624 = vmul.f32 %v615, %v616
    %v625 = vadd.f32 %v623, %v624
    %v626 = vtanh.pop %v625
    %v627 = vmul.f32 %v622, %v626
    %s628 = sadd.s32 %s379, 2
    %p629 = scmp.lt.s32.totalorder %s628, 8
    %s630 = scalar_select %p629, 1, 0
    %v631 = vstv %s630
    %vm632 = vcmp.eq.s32.totalorder %v631, 1
    %v633 = vsel %vm632, %v625, %v508
    %v634 = vsel %vm632, %v627, %v509
    %s635 = scalar_lea.vmem [#allocation10], 16
    %636 = vst [vmem:[%s635] sm:$0xff] %v634
    %s637 = scalar_lea.vmem [#allocation4], 96
    %v638 = vld [vmem:[%s637] sm:$0xff]
    %v639 = vld [vmem:[%s637 + $0x8] sm:$0xff]
    %v640 = vld [vmem:[%s637 + $0x10] sm:$0xff]
    %v641 = vld [vmem:[%s637 + $0x18] sm:$0xff]
    %v642 = vpack.c.bf16 %v634, %v634
    %643 = vmatprep.subr.bf16.mxu0 %v206
    %644 = vmatpush1.bf16.msra.mxu0 %v205
    %645 = vmatprep.subr.bf16.mxu0 %v210
    %646 = vmatpush1.bf16.msra.mxu0 %v209
    %647 = vmatprep.subr.bf16.mxu0 %v214
    %648 = vmatpush1.bf16.msra.mxu0 %v213
    %649 = vmatprep.subr.bf16.mxu0 %v218
    %650 = vmatpush1.bf16.msra.mxu0 %v217
    %651 = vmatprep.subr.bf16.mxu0 %v222
    %652 = vmatpush1.bf16.msra.mxu0 %v221
    %653 = vmatprep.subr.bf16.mxu0 %v226
    %654 = vmatpush1.bf16.msra.mxu0 %v225
    %655 = vmatprep.subr.bf16.mxu0 %v230
    %656 = vmatpush1.bf16.msra.mxu0 %v229
    %657 = vmatprep.subr.bf16.mxu0 %v234
    %658 = vmatpush1.bf16.msra.mxu0 %v233
    %659 = vmatprep.subr.bf16.mxu0 0
    %660 = vmatpush1.bf16.msra.mxu0 0
    %661 = vmatprep.subr.bf16.mxu0 0
    %662 = vmatpush1.bf16.msra.mxu0 0
    %663 = vmatprep.subr.bf16.mxu0 0
    %664 = vmatpush1.bf16.msra.mxu0 0
    %665 = vmatprep.subr.bf16.mxu0 0
    %666 = vmatpush1.bf16.msra.mxu0 0
    %667 = vmatprep.subr.bf16.mxu0 0
    %668 = vmatpush1.bf16.msra.mxu0 0
    %669 = vmatprep.subr.bf16.mxu0 0
    %670 = vmatpush1.bf16.msra.mxu0 0
    %671 = vmatprep.subr.bf16.mxu0 0
    %672 = vmatpush1.bf16.msra.mxu0 0
    %673 = vmatprep.subr.bf16.mxu0 0
    %674 = vmatpush1.bf16.msra.mxu0 0
    %675 = vmatprep.mubr.bf16.mxu0 0
    %676 = vmatmul.mubr.bf16.gmra.mrb[0].mxu0 %v642
    %v677 = vpop.f32.mrb[0].mxu0
    %v678 = vadd.f32 0.0, %v677
    %v679 = vpop.f32.mrb[0].mxu0
    %v680 = vadd.f32 0.0, %v679
    %v681 = vpop.f32.mrb[0].mxu0
    %v682 = vpop.f32.mrb[0].mxu0
    %683 = vdwg.mxu0
    %684 = vmatprep.subr.bf16.mxu0 %v208
    %685 = vmatpush1.bf16.msra.mxu0 %v207
    %686 = vmatprep.subr.bf16.mxu0 %v212
    %687 = vmatpush1.bf16.msra.mxu0 %v211
    %688 = vmatprep.subr.bf16.mxu0 %v216
    %689 = vmatpush1.bf16.msra.mxu0 %v215
    %690 = vmatprep.subr.bf16.mxu0 %v220
    %691 = vmatpush1.bf16.msra.mxu0 %v219
    %692 = vmatprep.subr.bf16.mxu0 %v224
    %693 = vmatpush1.bf16.msra.mxu0 %v223
    %694 = vmatprep.subr.bf16.mxu0 %v228
    %695 = vmatpush1.bf16.msra.mxu0 %v227
    %696 = vmatprep.subr.bf16.mxu0 %v232
    %697 = vmatpush1.bf16.msra.mxu0 %v231
    %698 = vmatprep.subr.bf16.mxu0 %v236
    %699 = vmatpush1.bf16.msra.mxu0 %v235
    %700 = vmatprep.subr.bf16.mxu0 0
    %701 = vmatpush1.bf16.msra.mxu0 0
    %702 = vmatprep.subr.bf16.mxu0 0
    %703 = vmatpush1.bf16.msra.mxu0 0
    %704 = vmatprep.subr.bf16.mxu0 0
    %705 = vmatpush1.bf16.msra.mxu0 0
    %706 = vmatprep.subr.bf16.mxu0 0
    %707 = vmatpush1.bf16.msra.mxu0 0
    %708 = vmatprep.subr.bf16.mxu0 0
    %709 = vmatpush1.bf16.msra.mxu0 0
    %710 = vmatprep.subr.bf16.mxu0 0
    %711 = vmatpush1.bf16.msra.mxu0 0
    %712 = vmatprep.subr.bf16.mxu0 0
    %713 = vmatpush1.bf16.msra.mxu0 0
    %714 = vmatprep.subr.bf16.mxu0 0
    %715 = vmatpush1.bf16.msra.mxu0 0
    %716 = vmatprep.mubr.bf16.mxu0 0
    %717 = vmatmul.mubr.bf16.gmra.mrb[0].mxu0 %v642
    %v718 = vpop.f32.mrb[0].mxu0
    %v719 = vadd.f32 0.0, %v718
    %v720 = vpop.f32.mrb[0].mxu0
    %v721 = vadd.f32 0.0, %v720
    %v722 = vpop.f32.mrb[0].mxu0
    %v723 = vpop.f32.mrb[0].mxu0
    %724 = vdwg.mxu0
    %v725 = vadd.f32 %v638, %v678
    %v726 = vadd.f32 %v639, %v680
    %v727 = vadd.f32 %v640, %v719
    %v728 = vadd.f32 %v641, %v721
    %v729 = vxor.u32 %v725, 2147483648
    %v730 = vmul.f32 %v729, 1.442695
    %v731 = vpow.pop %v730
    %v732 = vadd.f32 %v731, 1.0
    %v733 = vrcp.pop %v732
    %v734 = vmul.f32 1.0, %v733
    %v735 = vxor.u32 %v726, 2147483648
    %v736 = vmul.f32 %v735, 1.442695
    %v737 = vpow.pop %v736
    %v738 = vadd.f32 %v737, 1.0
    %v739 = vrcp.pop %v738
    %v740 = vmul.f32 1.0, %v739
    %v741 = vtanh.pop %v727
    %v742 = vxor.u32 %v728, 2147483648
    %v743 = vmul.f32 %v742, 1.442695
    %v744 = vpow.pop %v743
    %v745 = vadd.f32 %v744, 1.0
    %v746 = vrcp.pop %v745
    %v747 = vmul.f32 1.0, %v746
    %v748 = vmul.f32 %v633, %v734
    %v749 = vmul.f32 %v740, %v741
    %v750 = vadd.f32 %v748, %v749
    %v751 = vtanh.pop %v750
    %v752 = vmul.f32 %v747, %v751
    %s753 = sadd.s32 %s379, 3
    %p754 = scmp.lt.s32.totalorder %s753, 8
    %s755 = scalar_select %p754, 1, 0
    %v756 = vstv %s755
    %vm757 = vcmp.eq.s32.totalorder %v756, 1
    %v758 = vsel %vm757, %v750, %v633
    %v759 = vsel %vm757, %v752, %v634
    %s760 = scalar_lea.vmem [#allocation10], 24
    %761 = vst [vmem:[%s760] sm:$0xff] %v759
    %s762 = scalar_lea.vmem [#allocation4], 128
    %v763 = vld [vmem:[%s762] sm:$0xff]
    %v764 = vld [vmem:[%s762 + $0x8] sm:$0xff]
    %v765 = vld [vmem:[%s762 + $0x10] sm:$0xff]
    %v766 = vld [vmem:[%s762 + $0x18] sm:$0xff]
    %v767 = vpack.c.bf16 %v759, %v759
    %768 = vmatprep.subr.bf16.mxu0 %v206
    %769 = vmatpush1.bf16.msra.mxu0 %v205
    %770 = vmatprep.subr.bf16.mxu0 %v210
    %771 = vmatpush1.bf16.msra.mxu0 %v209
    %772 = vmatprep.subr.bf16.mxu0 %v214
    %773 = vmatpush1.bf16.msra.mxu0 %v213
    %774 = vmatprep.subr.bf16.mxu0 %v218
    %775 = vmatpush1.bf16.msra.mxu0 %v217
    %776 = vmatprep.subr.bf16.mxu0 %v222
    %777 = vmatpush1.bf16.msra.mxu0 %v221
    %778 = vmatprep.subr.bf16.mxu0 %v226
    %779 = vmatpush1.bf16.msra.mxu0 %v225
    %780 = vmatprep.subr.bf16.mxu0 %v230
    %781 = vmatpush1.bf16.msra.mxu0 %v229
    %782 = vmatprep.subr.bf16.mxu0 %v234
    %783 = vmatpush1.bf16.msra.mxu0 %v233
    %784 = vmatprep.subr.bf16.mxu0 0
    %785 = vmatpush1.bf16.msra.mxu0 0
    %786 = vmatprep.subr.bf16.mxu0 0
    %787 = vmatpush1.bf16.msra.mxu0 0
    %788 = vmatprep.subr.bf16.mxu0 0
    %789 = vmatpush1.bf16.msra.mxu0 0
    %790 = vmatprep.subr.bf16.mxu0 0
    %791 = vmatpush1.bf16.msra.mxu0 0
    %792 = vmatprep.subr.bf16.mxu0 0
    %793 = vmatpush1.bf16.msra.mxu0 0
    %794 = vmatprep.subr.bf16.mxu0 0
    %795 = vmatpush1.bf16.msra.mxu0 0
    %796 = vmatprep.subr.bf16.mxu0 0
    %797 = vmatpush1.bf16.msra.mxu0 0
    %798 = vmatprep.subr.bf16.mxu0 0
    %799 = vmatpush1.bf16.msra.mxu0 0
    %800 = vmatprep.mubr.bf16.mxu0 0
    %801 = vmatmul.mubr.bf16.gmra.mrb[0].mxu0 %v767
    %v802 = vpop.f32.mrb[0].mxu0
    %v803 = vadd.f32 0.0, %v802
    %v804 = vpop.f32.mrb[0].mxu0
    %v805 = vadd.f32 0.0, %v804
    %v806 = vpop.f32.mrb[0].mxu0
    %v807 = vpop.f32.mrb[0].mxu0
    %808 = vdwg.mxu0
    %809 = vmatprep.subr.bf16.mxu0 %v208
    %810 = vmatpush1.bf16.msra.mxu0 %v207
    %811 = vmatprep.subr.bf16.mxu0 %v212
    %812 = vmatpush1.bf16.msra.mxu0 %v211
    %813 = vmatprep.subr.bf16.mxu0 %v216
    %814 = vmatpush1.bf16.msra.mxu0 %v215
    %815 = vmatprep.subr.bf16.mxu0 %v220
    %816 = vmatpush1.bf16.msra.mxu0 %v219
    %817 = vmatprep.subr.bf16.mxu0 %v224
    %818 = vmatpush1.bf16.msra.mxu0 %v223
    %819 = vmatprep.subr.bf16.mxu0 %v228
    %820 = vmatpush1.bf16.msra.mxu0 %v227
    %821 = vmatprep.subr.bf16.mxu0 %v232
    %822 = vmatpush1.bf16.msra.mxu0 %v231
    %823 = vmatprep.subr.bf16.mxu0 %v236
    %824 = vmatpush1.bf16.msra.mxu0 %v235
    %825 = vmatprep.subr.bf16.mxu0 0
    %826 = vmatpush1.bf16.msra.mxu0 0
    %827 = vmatprep.subr.bf16.mxu0 0
    %828 = vmatpush1.bf16.msra.mxu0 0
    %829 = vmatprep.subr.bf16.mxu0 0
    %830 = vmatpush1.bf16.msra.mxu0 0
    %831 = vmatprep.subr.bf16.mxu0 0
    %832 = vmatpush1.bf16.msra.mxu0 0
    %833 = vmatprep.subr.bf16.mxu0 0
    %834 = vmatpush1.bf16.msra.mxu0 0
    %835 = vmatprep.subr.bf16.mxu0 0
    %836 = vmatpush1.bf16.msra.mxu0 0
    %837 = vmatprep.subr.bf16.mxu0 0
    %838 = vmatpush1.bf16.msra.mxu0 0
    %839 = vmatprep.subr.bf16.mxu0 0
    %840 = vmatpush1.bf16.msra.mxu0 0
    %841 = vmatprep.mubr.bf16.mxu0 0
    %842 = vmatmul.mubr.bf16.gmra.mrb[0].mxu0 %v767
    %v843 = vpop.f32.mrb[0].mxu0
    %v844 = vadd.f32 0.0, %v843
    %v845 = vpop.f32.mrb[0].mxu0
    %v846 = vadd.f32 0.0, %v845
    %v847 = vpop.f32.mrb[0].mxu0
    %v848 = vpop.f32.mrb[0].mxu0
    %849 = vdwg.mxu0
    %v850 = vadd.f32 %v763, %v803
    %v851 = vadd.f32 %v764, %v805
    %v852 = vadd.f32 %v765, %v844
    %v853 = vadd.f32 %v766, %v846
    %v854 = vxor.u32 %v850, 2147483648
    %v855 = vmul.f32 %v854, 1.442695
    %v856 = vpow.pop %v855
    %v857 = vadd.f32 %v856, 1.0
    %v858 = vrcp.pop %v857
    %v859 = vmul.f32 1.0, %v858
    %v860 = vxor.u32 %v851, 2147483648
    %v861 = vmul.f32 %v860, 1.442695
    %v862 = vpow.pop %v861
    %v863 = vadd.f32 %v862, 1.0
    %v864 = vrcp.pop %v863
    %v865 = vmul.f32 1.0, %v864
    %v866 = vtanh.pop %v852
    %v867 = vxor.u32 %v853, 2147483648
    %v868 = vmul.f32 %v867, 1.442695
    %v869 = vpow.pop %v868
    %v870 = vadd.f32 %v869, 1.0
    %v871 = vrcp.pop %v870
    %v872 = vmul.f32 1.0, %v871
    %v873 = vmul.f32 %v758, %v859
    %v874 = vmul.f32 %v865, %v866
    %v875 = vadd.f32 %v873, %v874
    %v876 = vtanh.pop %v875
    %v877 = vmul.f32 %v872, %v876
    %s878 = sadd.s32 %s379, 4
    %p879 = scmp.lt.s32.totalorder %s878, 8
    %s880 = scalar_select %p879, 1, 0
    %v881 = vstv %s880
    %vm882 = vcmp.eq.s32.totalorder %v881, 1
    %v883 = vsel %vm882, %v875, %v758
    %v884 = vsel %vm882, %v877, %v759
    %s885 = scalar_lea.vmem [#allocation10], 32
    %886 = vst [vmem:[%s885] sm:$0xff] %v884
    %s887 = scalar_lea.vmem [#allocation4], 160
    %v888 = vld [vmem:[%s887] sm:$0xff]
    %v889 = vld [vmem:[%s887 + $0x8] sm:$0xff]
    %v890 = vld [vmem:[%s887 + $0x10] sm:$0xff]
    %v891 = vld [vmem:[%s887 + $0x18] sm:$0xff]
    %v892 = vpack.c.bf16 %v884, %v884
    %893 = vmatprep.subr.bf16.mxu0 %v206
    %894 = vmatpush1.bf16.msra.mxu0 %v205
    %895 = vmatprep.subr.bf16.mxu0 %v210
    %896 = vmatpush1.bf16.msra.mxu0 %v209
    %897 = vmatprep.subr.bf16.mxu0 %v214
    %898 = vmatpush1.bf16.msra.mxu0 %v213
    %899 = vmatprep.subr.bf16.mxu0 %v218
    %900 = vmatpush1.bf16.msra.mxu0 %v217
    %901 = vmatprep.subr.bf16.mxu0 %v222
    %902 = vmatpush1.bf16.msra.mxu0 %v221
    %903 = vmatprep.subr.bf16.mxu0 %v226
    %904 = vmatpush1.bf16.msra.mxu0 %v225
    %905 = vmatprep.subr.bf16.mxu0 %v230
    %906 = vmatpush1.bf16.msra.mxu0 %v229
    %907 = vmatprep.subr.bf16.mxu0 %v234
    %908 = vmatpush1.bf16.msra.mxu0 %v233
    %909 = vmatprep.subr.bf16.mxu0 0
    %910 = vmatpush1.bf16.msra.mxu0 0
    %911 = vmatprep.subr.bf16.mxu0 0
    %912 = vmatpush1.bf16.msra.mxu0 0
    %913 = vmatprep.subr.bf16.mxu0 0
    %914 = vmatpush1.bf16.msra.mxu0 0
    %915 = vmatprep.subr.bf16.mxu0 0
    %916 = vmatpush1.bf16.msra.mxu0 0
    %917 = vmatprep.subr.bf16.mxu0 0
    %918 = vmatpush1.bf16.msra.mxu0 0
    %919 = vmatprep.subr.bf16.mxu0 0
    %920 = vmatpush1.bf16.msra.mxu0 0
    %921 = vmatprep.subr.bf16.mxu0 0
    %922 = vmatpush1.bf16.msra.mxu0 0
    %923 = vmatprep.subr.bf16.mxu0 0
    %924 = vmatpush1.bf16.msra.mxu0 0
    %925 = vmatprep.mubr.bf16.mxu0 0
    %926 = vmatmul.mubr.bf16.gmra.mrb[0].mxu0 %v892
    %v927 = vpop.f32.mrb[0].mxu0
    %v928 = vadd.f32 0.0, %v927
    %v929 = vpop.f32.mrb[0].mxu0
    %v930 = vadd.f32 0.0, %v929
    %v931 = vpop.f32.mrb[0].mxu0
    %v932 = vpop.f32.mrb[0].mxu0
    %933 = vdwg.mxu0
    %934 = vmatprep.subr.bf16.mxu0 %v208
    %935 = vmatpush1.bf16.msra.mxu0 %v207
    %936 = vmatprep.subr.bf16.mxu0 %v212
    %937 = vmatpush1.bf16.msra.mxu0 %v211
    %938 = vmatprep.subr.bf16.mxu0 %v216
    %939 = vmatpush1.bf16.msra.mxu0 %v215
    %940 = vmatprep.subr.bf16.mxu0 %v220
    %941 = vmatpush1.bf16.msra.mxu0 %v219
    %942 = vmatprep.subr.bf16.mxu0 %v224
    %943 = vmatpush1.bf16.msra.mxu0 %v223
    %944 = vmatprep.subr.bf16.mxu0 %v228
    %945 = vmatpush1.bf16.msra.mxu0 %v227
    %946 = vmatprep.subr.bf16.mxu0 %v232
    %947 = vmatpush1.bf16.msra.mxu0 %v231
    %948 = vmatprep.subr.bf16.mxu0 %v236
    %949 = vmatpush1.bf16.msra.mxu0 %v235
    %950 = vmatprep.subr.bf16.mxu0 0
    %951 = vmatpush1.bf16.msra.mxu0 0
    %952 = vmatprep.subr.bf16.mxu0 0
    %953 = vmatpush1.bf16.msra.mxu0 0
    %954 = vmatprep.subr.bf16.mxu0 0
    %955 = vmatpush1.bf16.msra.mxu0 0
    %956 = vmatprep.subr.bf16.mxu0 0
    %957 = vmatpush1.bf16.msra.mxu0 0
    %958 = vmatprep.subr.bf16.mxu0 0
    %959 = vmatpush1.bf16.msra.mxu0 0
    %960 = vmatprep.subr.bf16.mxu0 0
    %961 = vmatpush1.bf16.msra.mxu0 0
    %962 = vmatprep.subr.bf16.mxu0 0
    %963 = vmatpush1.bf16.msra.mxu0 0
    %964 = vmatprep.subr.bf16.mxu0 0
    %965 = vmatpush1.bf16.msra.mxu0 0
    %966 = vmatprep.mubr.bf16.mxu0 0
    %967 = vmatmul.mubr.bf16.gmra.mrb[0].mxu0 %v892
    %v968 = vpop.f32.mrb[0].mxu0
    %v969 = vadd.f32 0.0, %v968
    %v970 = vpop.f32.mrb[0].mxu0
    %v971 = vadd.f32 0.0, %v970
    %v972 = vpop.f32.mrb[0].mxu0
    %v973 = vpop.f32.mrb[0].mxu0
    %974 = vdwg.mxu0
    %v975 = vadd.f32 %v888, %v928
    %v976 = vadd.f32 %v889, %v930
    %v977 = vadd.f32 %v890, %v969
    %v978 = vadd.f32 %v891, %v971
    %v979 = vxor.u32 %v975, 2147483648
    %v980 = vmul.f32 %v979, 1.442695
    %v981 = vpow.pop %v980
    %v982 = vadd.f32 %v981, 1.0
    %v983 = vrcp.pop %v982
    %v984 = vmul.f32 1.0, %v983
    %v985 = vxor.u32 %v976, 2147483648
    %v986 = vmul.f32 %v985, 1.442695
    %v987 = vpow.pop %v986
    %v988 = vadd.f32 %v987, 1.0
    %v989 = vrcp.pop %v988
    %v990 = vmul.f32 1.0, %v989
    %v991 = vtanh.pop %v977
    %v992 = vxor.u32 %v978, 2147483648
    %v993 = vmul.f32 %v992, 1.442695
    %v994 = vpow.pop %v993
    %v995 = vadd.f32 %v994, 1.0
    %v996 = vrcp.pop %v995
    %v997 = vmul.f32 1.0, %v996
    %v998 = vmul.f32 %v883, %v984
    %v999 = vmul.f32 %v990, %v991
    %v1000 = vadd.f32 %v998, %v999
    %v1001 = vtanh.pop %v1000
    %v1002 = vmul.f32 %v997, %v1001
    %s1003 = sadd.s32 %s379, 5
    %p1004 = scmp.lt.s32.totalorder %s1003, 8
    %s1005 = scalar_select %p1004, 1, 0
    %v1006 = vstv %s1005
    %vm1007 = vcmp.eq.s32.totalorder %v1006, 1
    %v1008 = vsel %vm1007, %v1000, %v883
    %v1009 = vsel %vm1007, %v1002, %v884
    %s1010 = scalar_lea.vmem [#allocation10], 40
    %1011 = vst [vmem:[%s1010] sm:$0xff] %v1009
    %s1012 = scalar_lea.vmem [#allocation4], 192
    %v1013 = vld [vmem:[%s1012] sm:$0xff]
    %v1014 = vld [vmem:[%s1012 + $0x8] sm:$0xff]
    %v1015 = vld [vmem:[%s1012 + $0x10] sm:$0xff]
    %v1016 = vld [vmem:[%s1012 + $0x18] sm:$0xff]
    %v1017 = vpack.c.bf16 %v1009, %v1009
    %1018 = vmatprep.subr.bf16.mxu0 %v206
    %1019 = vmatpush1.bf16.msra.mxu0 %v205
    %1020 = vmatprep.subr.bf16.mxu0 %v210
    %1021 = vmatpush1.bf16.msra.mxu0 %v209
    %1022 = vmatprep.subr.bf16.mxu0 %v214
    %1023 = vmatpush1.bf16.msra.mxu0 %v213
    %1024 = vmatprep.subr.bf16.mxu0 %v218
    %1025 = vmatpush1.bf16.msra.mxu0 %v217
    %1026 = vmatprep.subr.bf16.mxu0 %v222
    %1027 = vmatpush1.bf16.msra.mxu0 %v221
    %1028 = vmatprep.subr.bf16.mxu0 %v226
    %1029 = vmatpush1.bf16.msra.mxu0 %v225
    %1030 = vmatprep.subr.bf16.mxu0 %v230
    %1031 = vmatpush1.bf16.msra.mxu0 %v229
    %1032 = vmatprep.subr.bf16.mxu0 %v234
    %1033 = vmatpush1.bf16.msra.mxu0 %v233
    %1034 = vmatprep.subr.bf16.mxu0 0
    %1035 = vmatpush1.bf16.msra.mxu0 0
    %1036 = vmatprep.subr.bf16.mxu0 0
    %1037 = vmatpush1.bf16.msra.mxu0 0
    %1038 = vmatprep.subr.bf16.mxu0 0
    %1039 = vmatpush1.bf16.msra.mxu0 0
    %1040 = vmatprep.subr.bf16.mxu0 0
    %1041 = vmatpush1.bf16.msra.mxu0 0
    %1042 = vmatprep.subr.bf16.mxu0 0
    %1043 = vmatpush1.bf16.msra.mxu0 0
    %1044 = vmatprep.subr.bf16.mxu0 0
    %1045 = vmatpush1.bf16.msra.mxu0 0
    %1046 = vmatprep.subr.bf16.mxu0 0
    %1047 = vmatpush1.bf16.msra.mxu0 0
    %1048 = vmatprep.subr.bf16.mxu0 0
    %1049 = vmatpush1.bf16.msra.mxu0 0
    %1050 = vmatprep.mubr.bf16.mxu0 0
    %1051 = vmatmul.mubr.bf16.gmra.mrb[0].mxu0 %v1017
    %v1052 = vpop.f32.mrb[0].mxu0
    %v1053 = vadd.f32 0.0, %v1052
    %v1054 = vpop.f32.mrb[0].mxu0
    %v1055 = vadd.f32 0.0, %v1054
    %v1056 = vpop.f32.mrb[0].mxu0
    %v1057 = vpop.f32.mrb[0].mxu0
    %1058 = vdwg.mxu0
    %1059 = vmatprep.subr.bf16.mxu0 %v208
    %1060 = vmatpush1.bf16.msra.mxu0 %v207
    %1061 = vmatprep.subr.bf16.mxu0 %v212
    %1062 = vmatpush1.bf16.msra.mxu0 %v211
    %1063 = vmatprep.subr.bf16.mxu0 %v216
    %1064 = vmatpush1.bf16.msra.mxu0 %v215
    %1065 = vmatprep.subr.bf16.mxu0 %v220
    %1066 = vmatpush1.bf16.msra.mxu0 %v219
    %1067 = vmatprep.subr.bf16.mxu0 %v224
    %1068 = vmatpush1.bf16.msra.mxu0 %v223
    %1069 = vmatprep.subr.bf16.mxu0 %v228
    %1070 = vmatpush1.bf16.msra.mxu0 %v227
    %1071 = vmatprep.subr.bf16.mxu0 %v232
    %1072 = vmatpush1.bf16.msra.mxu0 %v231
    %1073 = vmatprep.subr.bf16.mxu0 %v236
    %1074 = vmatpush1.bf16.msra.mxu0 %v235
    %1075 = vmatprep.subr.bf16.mxu0 0
    %1076 = vmatpush1.bf16.msra.mxu0 0
    %1077 = vmatprep.subr.bf16.mxu0 0
    %1078 = vmatpush1.bf16.msra.mxu0 0
    %1079 = vmatprep.subr.bf16.mxu0 0
    %1080 = vmatpush1.bf16.msra.mxu0 0
    %1081 = vmatprep.subr.bf16.mxu0 0
    %1082 = vmatpush1.bf16.msra.mxu0 0
    %1083 = vmatprep.subr.bf16.mxu0 0
    %1084 = vmatpush1.bf16.msra.mxu0 0
    %1085 = vmatprep.subr.bf16.mxu0 0
    %1086 = vmatpush1.bf16.msra.mxu0 0
    %1087 = vmatprep.subr.bf16.mxu0 0
    %1088 = vmatpush1.bf16.msra.mxu0 0
    %1089 = vmatprep.subr.bf16.mxu0 0
    %1090 = vmatpush1.bf16.msra.mxu0 0
    %1091 = vmatprep.mubr.bf16.mxu0 0
    %1092 = vmatmul.mubr.bf16.gmra.mrb[0].mxu0 %v1017
    %v1093 = vpop.f32.mrb[0].mxu0
    %v1094 = vadd.f32 0.0, %v1093
    %v1095 = vpop.f32.mrb[0].mxu0
    %v1096 = vadd.f32 0.0, %v1095
    %v1097 = vpop.f32.mrb[0].mxu0
    %v1098 = vpop.f32.mrb[0].mxu0
    %1099 = vdwg.mxu0
    %v1100 = vadd.f32 %v1013, %v1053
    %v1101 = vadd.f32 %v1014, %v1055
    %v1102 = vadd.f32 %v1015, %v1094
    %v1103 = vadd.f32 %v1016, %v1096
    %v1104 = vxor.u32 %v1100, 2147483648
    %v1105 = vmul.f32 %v1104, 1.442695
    %v1106 = vpow.pop %v1105
    %v1107 = vadd.f32 %v1106, 1.0
    %v1108 = vrcp.pop %v1107
    %v1109 = vmul.f32 1.0, %v1108
    %v1110 = vxor.u32 %v1101, 2147483648
    %v1111 = vmul.f32 %v1110, 1.442695
    %v1112 = vpow.pop %v1111
    %v1113 = vadd.f32 %v1112, 1.0
    %v1114 = vrcp.pop %v1113
    %v1115 = vmul.f32 1.0, %v1114
    %v1116 = vtanh.pop %v1102
    %v1117 = vxor.u32 %v1103, 2147483648
    %v1118 = vmul.f32 %v1117, 1.442695
    %v1119 = vpow.pop %v1118
    %v1120 = vadd.f32 %v1119, 1.0
    %v1121 = vrcp.pop %v1120
    %v1122 = vmul.f32 1.0, %v1121
    %v1123 = vmul.f32 %v1008, %v1109
    %v1124 = vmul.f32 %v1115, %v1116
    %v1125 = vadd.f32 %v1123, %v1124
    %v1126 = vtanh.pop %v1125
    %v1127 = vmul.f32 %v1122, %v1126
    %s1128 = sadd.s32 %s379, 6
    %p1129 = scmp.lt.s32.totalorder %s1128, 8
    %s1130 = scalar_select %p1129, 1, 0
    %v1131 = vstv %s1130
    %vm1132 = vcmp.eq.s32.totalorder %v1131, 1
    %v1133 = vsel %vm1132, %v1125, %v1008
    %v1134 = vsel %vm1132, %v1127, %v1009
    %s1135 = scalar_lea.vmem [#allocation10], 48
    %1136 = vst [vmem:[%s1135] sm:$0xff] %v1134
    %s1137 = scalar_lea.vmem [#allocation4], 224
    %v1138 = vld [vmem:[%s1137] sm:$0xff]
    %v1139 = vld [vmem:[%s1137 + $0x8] sm:$0xff]
    %v1140 = vld [vmem:[%s1137 + $0x10] sm:$0xff]
    %v1141 = vld [vmem:[%s1137 + $0x18] sm:$0xff]
    %v1142 = vpack.c.bf16 %v1134, %v1134
    %1143 = vmatprep.subr.bf16.mxu0 %v206
    %1144 = vmatpush1.bf16.msra.mxu0 %v205
    %1145 = vmatprep.subr.bf16.mxu0 %v210
    %1146 = vmatpush1.bf16.msra.mxu0 %v209
    %1147 = vmatprep.subr.bf16.mxu0 %v214
    %1148 = vmatpush1.bf16.msra.mxu0 %v213
    %1149 = vmatprep.subr.bf16.mxu0 %v218
    %1150 = vmatpush1.bf16.msra.mxu0 %v217
    %1151 = vmatprep.subr.bf16.mxu0 %v222
    %1152 = vmatpush1.bf16.msra.mxu0 %v221
    %1153 = vmatprep.subr.bf16.mxu0 %v226
    %1154 = vmatpush1.bf16.msra.mxu0 %v225
    %1155 = vmatprep.subr.bf16.mxu0 %v230
    %1156 = vmatpush1.bf16.msra.mxu0 %v229
    %1157 = vmatprep.subr.bf16.mxu0 %v234
    %1158 = vmatpush1.bf16.msra.mxu0 %v233
    %1159 = vmatprep.subr.bf16.mxu0 0
    %1160 = vmatpush1.bf16.msra.mxu0 0
    %1161 = vmatprep.subr.bf16.mxu0 0
    %1162 = vmatpush1.bf16.msra.mxu0 0
    %1163 = vmatprep.subr.bf16.mxu0 0
    %1164 = vmatpush1.bf16.msra.mxu0 0
    %1165 = vmatprep.subr.bf16.mxu0 0
    %1166 = vmatpush1.bf16.msra.mxu0 0
    %1167 = vmatprep.subr.bf16.mxu0 0
    %1168 = vmatpush1.bf16.msra.mxu0 0
    %1169 = vmatprep.subr.bf16.mxu0 0
    %1170 = vmatpush1.bf16.msra.mxu0 0
    %1171 = vmatprep.subr.bf16.mxu0 0
    %1172 = vmatpush1.bf16.msra.mxu0 0
    %1173 = vmatprep.subr.bf16.mxu0 0
    %1174 = vmatpush1.bf16.msra.mxu0 0
    %1175 = vmatprep.mubr.bf16.mxu0 0
    %1176 = vmatmul.mubr.bf16.gmra.mrb[0].mxu0 %v1142
    %v1177 = vpop.f32.mrb[0].mxu0
    %v1178 = vadd.f32 0.0, %v1177
    %v1179 = vpop.f32.mrb[0].mxu0
    %v1180 = vadd.f32 0.0, %v1179
    %v1181 = vpop.f32.mrb[0].mxu0
    %v1182 = vpop.f32.mrb[0].mxu0
    %1183 = vdwg.mxu0
    %1184 = vmatprep.subr.bf16.mxu0 %v208
    %1185 = vmatpush1.bf16.msra.mxu0 %v207
    %1186 = vmatprep.subr.bf16.mxu0 %v212
    %1187 = vmatpush1.bf16.msra.mxu0 %v211
    %1188 = vmatprep.subr.bf16.mxu0 %v216
    %1189 = vmatpush1.bf16.msra.mxu0 %v215
    %1190 = vmatprep.subr.bf16.mxu0 %v220
    %1191 = vmatpush1.bf16.msra.mxu0 %v219
    %1192 = vmatprep.subr.bf16.mxu0 %v224
    %1193 = vmatpush1.bf16.msra.mxu0 %v223
    %1194 = vmatprep.subr.bf16.mxu0 %v228
    %1195 = vmatpush1.bf16.msra.mxu0 %v227
    %1196 = vmatprep.subr.bf16.mxu0 %v232
    %1197 = vmatpush1.bf16.msra.mxu0 %v231
    %1198 = vmatprep.subr.bf16.mxu0 %v236
    %1199 = vmatpush1.bf16.msra.mxu0 %v235
    %1200 = vmatprep.subr.bf16.mxu0 0
    %1201 = vmatpush1.bf16.msra.mxu0 0
    %1202 = vmatprep.subr.bf16.mxu0 0
    %1203 = vmatpush1.bf16.msra.mxu0 0
    %1204 = vmatprep.subr.bf16.mxu0 0
    %1205 = vmatpush1.bf16.msra.mxu0 0
    %1206 = vmatprep.subr.bf16.mxu0 0
    %1207 = vmatpush1.bf16.msra.mxu0 0
    %1208 = vmatprep.subr.bf16.mxu0 0
    %1209 = vmatpush1.bf16.msra.mxu0 0
    %1210 = vmatprep.subr.bf16.mxu0 0
    %1211 = vmatpush1.bf16.msra.mxu0 0
    %1212 = vmatprep.subr.bf16.mxu0 0
    %1213 = vmatpush1.bf16.msra.mxu0 0
    %1214 = vmatprep.subr.bf16.mxu0 0
    %1215 = vmatpush1.bf16.msra.mxu0 0
    %1216 = vmatprep.mubr.bf16.mxu0 0
    %1217 = vmatmul.mubr.bf16.gmra.mrb[0].mxu0 %v1142
    %v1218 = vpop.f32.mrb[0].mxu0
    %v1219 = vadd.f32 0.0, %v1218
    %v1220 = vpop.f32.mrb[0].mxu0
    %v1221 = vadd.f32 0.0, %v1220
    %v1222 = vpop.f32.mrb[0].mxu0
    %v1223 = vpop.f32.mrb[0].mxu0
    %1224 = vdwg.mxu0
    %v1225 = vadd.f32 %v1138, %v1178
    %v1226 = vadd.f32 %v1139, %v1180
    %v1227 = vadd.f32 %v1140, %v1219
    %v1228 = vadd.f32 %v1141, %v1221
    %v1229 = vxor.u32 %v1225, 2147483648
    %v1230 = vmul.f32 %v1229, 1.442695
    %v1231 = vpow.pop %v1230
    %v1232 = vadd.f32 %v1231, 1.0
    %v1233 = vrcp.pop %v1232
    %v1234 = vmul.f32 1.0, %v1233
    %v1235 = vxor.u32 %v1226, 2147483648
    %v1236 = vmul.f32 %v1235, 1.442695
    %v1237 = vpow.pop %v1236
    %v1238 = vadd.f32 %v1237, 1.0
    %v1239 = vrcp.pop %v1238
    %v1240 = vmul.f32 1.0, %v1239
    %v1241 = vtanh.pop %v1227
    %v1242 = vxor.u32 %v1228, 2147483648
    %v1243 = vmul.f32 %v1242, 1.442695
    %v1244 = vpow.pop %v1243
    %v1245 = vadd.f32 %v1244, 1.0
    %v1246 = vrcp.pop %v1245
    %v1247 = vmul.f32 1.0, %v1246
    %v1248 = vmul.f32 %v1133, %v1234
    %v1249 = vmul.f32 %v1240, %v1241
    %v1250 = vadd.f32 %v1248, %v1249
    %v1251 = vtanh.pop %v1250
    %v1252 = vmul.f32 %v1247, %v1251
    %s1253 = sadd.s32 %s379, 7
    %p1254 = scmp.lt.s32.totalorder %s1253, 8
    %s1255 = scalar_select %p1254, 1, 0
    %v1256 = vstv %s1255
    %vm1257 = vcmp.eq.s32.totalorder %v1256, 1
    %v1258 = vsel %vm1257, %v1250, %v1133
    %v1259 = vsel %vm1257, %v1252, %v1134
    %s1260 = scalar_lea.vmem [#allocation10], 56
    %1261 = vst [vmem:[%s1260] sm:$0xff] %v1259
    %1262 = vst [vmem:[#allocation2] sm:$0xff] %v1258
    %1263 = vst [vmem:[#allocation3] sm:$0xff] %v1259
    // Predicated region
    $region34: #{tpu_custom_call.1} parent=1 // pred_check
      %p1264 = pneg %p62
    $region35: #{tpu_custom_call.1} parent=1 // pred_check_branch
      %1266 = sbr.rel (%p1264) target = $region37
    $region36: #{tpu_custom_call.1} parent=1 // pred_region
      %1267 = vst [vmem:[#allocation11] sm:$0xff] %v1258
      %1268 = vst [vmem:[#allocation13] sm:$0xff] %v1259
    $region37: #{tpu_custom_call.1} parent=1 // pred_fallthru
      _
    // Predicated region
    $region38: #{tpu_custom_call.1} parent=1 // pred_check
      _
    $region39: #{tpu_custom_call.1} parent=1 // pred_check_branch
      %1270 = sbr.rel (0) target = $region41
    $region40: #{tpu_custom_call.1} parent=1 // pred_region
      %s1272 = ssub.s32 1024, 1024
      %1273 = vsyncadd [#allocation6], %s1272
      %s1274 = sshll.u32 [#allocation10], 4
      %s1275 = int_to_ptr.vmem [resolvable:$true] %s1274
      %1280 = dma.vmem_to_hbm [thread:$0]  %s1275, 1024, %s4, [#allocation6], 128, 128, 8
    $region41: #{tpu_custom_call.1} parent=1 // pred_fallthru
      _
    // Predicated region
    $region42: #{tpu_custom_call.1} parent=1 // pred_check
      _
    $region43: #{tpu_custom_call.1} parent=1 // pred_check_branch
      %1282 = sbr.rel (0) target = $region45
    $region44: #{tpu_custom_call.1} parent=1 // pred_region
      %s1284 = ssub.s32 128, 128
      %1285 = vsyncadd [#allocation12], %s1284
      %s1287 = sshll.u32 [#allocation11], 4
      %s1288 = int_to_ptr.vmem [resolvable:$true] %s1287
      %1290 = dma.vmem_to_hbm [thread:$0]  %s1288, 128, %s5, [#allocation12]
    $region45: #{tpu_custom_call.1} parent=1 // pred_fallthru
      _
    // Predicated region
    $region46: #{tpu_custom_call.1} parent=1 // pred_check
      _
    $region47: #{tpu_custom_call.1} parent=1 // pred_check_branch
      %1292 = sbr.rel (0) target = $region49
    $region48: #{tpu_custom_call.1} parent=1 // pred_region
      %s1294 = ssub.s32 128, 128
      %1295 = vsyncadd [#allocation12], %s1294
      %s1297 = sshll.u32 [#allocation13], 4
      %s1298 = int_to_ptr.vmem [resolvable:$true] %s1297
      %1300 = dma.vmem_to_hbm [thread:$0]  %s1298, 128, %s6, [#allocation12]
    $region49: #{tpu_custom_call.1} parent=1 // pred_fallthru
      _
    // Predicated region
    $region50: #{tpu_custom_call.1} parent=1 // pred_check
      _
    $region51: #{tpu_custom_call.1} parent=1 // pred_check_branch
      %1302 = sbr.rel (0) target = $region53
    $region52: #{tpu_custom_call.1} parent=1 // pred_region
      %1303 = dma.done [#allocation6], 1024
    $region53: #{tpu_custom_call.1} parent=1 // pred_fallthru
      _
    // Predicated region
    $region54: #{tpu_custom_call.1} parent=1 // pred_check
      _
    $region55: #{tpu_custom_call.1} parent=1 // pred_check_branch
      %1305 = sbr.rel (0) target = $region57
    $region56: #{tpu_custom_call.1} parent=1 // pred_region
      %1306 = dma.done [#allocation12], 128
    $region57: #{tpu_custom_call.1} parent=1 // pred_fallthru
      _
    // Predicated region
    $region58: #{tpu_custom_call.1} parent=1 // pred_check
      _
    $region59: #{tpu_custom_call.1} parent=1 // pred_check_branch
      %1308 = sbr.rel (0) target = $region61
    $region60: #{tpu_custom_call.1} parent=1 // pred_region
      %1309 = dma.done [#allocation12], 128
    $region61: #{tpu_custom_call.1} parent=1 // pred_fallthru
      _
    %1310 = vsyncpa [#allocation5], 1
    %1311 = vsyncpa [#allocation8], 1
    %1312 = vsyncpa [#allocation6], 1
    %1313 = vsyncpa [#allocation12], 1

</llo_original>
